<compile_context>
chip_gen: v6e
topology: v6e:2x2x1
jax: 0.10.0
libtpu: 0.0.40
codegen_flags: <defaults>
</compile_context>

<pallas_src>
import functools

import jax
import jax.numpy as jnp
from jax import lax
from jax.experimental import pallas as pl
from jax.experimental.pallas import tpu as pltpu

_EPS = 1e-6                       # torch.nn.PairwiseDistance default eps
_MB = 8                           # x2 rows processed per inner step (general p)
_X2_FULL_D_BUDGET = 8 * 1024 * 1024   # max double-buffered full-D x2 block (bytes)
_VMEM_LIMIT = 48 * 1024 * 1024    # scoped VMEM request (fits v7x's 64 MiB physical)


def _round_up(x, m):
    return (x + m - 1) // m * m


def _choose_tile(dim, candidates, align):
    """Prefer a large candidate that divides dim exactly; else the largest <= dim;
    else round the whole (small) axis up to `align` (handled by wrapper padding)."""
    for c in candidates:
        if dim >= c and dim % c == 0:
            return c
    for c in candidates:
        if dim >= c:
            return c
    return _round_up(dim, align)


def _pow_p(a, p):
    if p == 1.0:
        return a
    if float(p).is_integer() and 2.0 <= p <= 4.0:
        ap = a
        for _ in range(int(p) - 1):   # small integer p: VALU multiplies, no EUP pow
            ap = ap * a
        return ap
    return a ** p                     # generic fractional p (EUP)


# ---------------------------------------------------------------------------
# p == 2 : MXU (Gram-matrix) kernel — pure matmul accumulation over k
# ---------------------------------------------------------------------------
def _pnorm_p2_kernel(x1_ref, x2_ref, s1_ref, s2_ref, o_ref, acc_ref, *,
                     td, x2_full_d, d_eps_sq):
    k = pl.program_id(3)

    @pl.when(k == 0)
    def _init():
        acc_ref[...] = jnp.zeros_like(acc_ref)

    x1 = x1_ref[0]                                     # (tn, td) native dtype
    if x2_full_d:
        doff = pl.multiple_of(k * td, td)
        x2 = x2_ref[0, :, pl.ds(doff, td)]             # (tm, td) slice of full-D block
    else:
        x2 = x2_ref[0]                                 # (tm, td)

    # Clean acc += dot chain: native-dtype operands, f32 accumulation.
    acc_ref[0] += lax.dot_general(x2, x1, (((1,), (1,)), ((), ())),
                                  preferred_element_type=jnp.float32)

    @pl.when(k == pl.num_programs(3) - 1)
    def _fin():
        # ||x1_n - x2_m + eps||^2 = s1[n] + s2[m] - 2<x1_n, x2_m> + D*eps^2
        sq = s1_ref[0] + s2_ref[0] - 2.0 * acc_ref[0] + d_eps_sq
        o_ref[0] = jnp.sqrt(jnp.maximum(sq, 0.0)).astype(o_ref.dtype)


# ---------------------------------------------------------------------------
# general p : VPU kernel — D on sublanes, N on lanes, (MB, td, tn) temporaries
# ---------------------------------------------------------------------------
def _pnorm_general_kernel(x1t_ref, x2_ref, o_ref, acc_ref, *,
                          p, td, x2_full_d, d_pad_corr):
    k = pl.program_id(3)

    @pl.when(k == 0)
    def _init():
        acc_ref[...] = jnp.zeros_like(acc_ref)

    # x1 arrives pre-transposed: D on sublanes, N on lanes.  Fold +eps in once
    # ((x1 - x2 + eps) == (x1 + eps) - x2) and hoist the broadcast out of the loop.
    x1p = x1t_ref[0].astype(jnp.float32) + _EPS        # (td, tn)
    x1e = x1p[None, :, :]                              # (1, td, tn)

    tm = acc_ref.shape[1]
    n_groups = tm // _MB                               # tm is a multiple of _MB
    doff = pl.multiple_of(k * td, td)

    def body(g, carry):
        off = pl.multiple_of(g * _MB, _MB)
        if x2_full_d:
            x2b = x2_ref[0, pl.ds(off, _MB), pl.ds(doff, td)]
        else:
            x2b = x2_ref[0, pl.ds(off, _MB), :]
        x2b = x2b.astype(jnp.float32)                  # (_MB, td)
        # (_MB, td, tn): reduction axis (td) is on sublanes -> VALU adds + one
        # sublane reduce per output vreg instead of per-vreg XLU lane reduces.
        a = jnp.abs(x1e - x2b[:, :, None])
        acc_ref[0, pl.ds(off, _MB), :] += jnp.sum(_pow_p(a, p), axis=1)
        return carry

    lax.fori_loop(0, n_groups, body, 0, unroll=2)

    @pl.when(k == pl.num_programs(3) - 1)
    def _fin():
        # Remove the exact eps^p contribution of zero-padded feature columns.
        acc = acc_ref[0] - d_pad_corr
        if p == 1.0:
            res = acc
        else:
            res = jnp.maximum(acc, 0.0) ** (1.0 / p)
        o_ref[0] = res.astype(o_ref.dtype)


# ---------------------------------------------------------------------------
# wrapper
# ---------------------------------------------------------------------------
def pairwise_pnorm(x1, x2, p=1.0):
    """Pallas implementation of PairwisePNorm.forward."""
    assert x1.ndim == x2.ndim, "x1 and x2 must have the same rank"
    p = float(p)
    assert p > 0.0
    squeeze_batch = False
    if x1.ndim == 2:
        x1, x2, squeeze_batch = x1[None], x2[None], True
    elif x1.ndim != 3:
        raise ValueError("Unexpected dimension")

    B, N, D = x1.shape
    B2, M, D2 = x2.shape
    assert B == B2 and D == D2, "batch / feature dims must match"
    out_dtype = x1.dtype

    if p == 2.0:
        tn = _choose_tile(N, (512, 256, 128), 128)
        tm = _choose_tile(M, (512, 256, 128, 64), 8)
        td = _choose_tile(D, (512, 256, 128), 128)
    else:
        tn = _choose_tile(N, (256, 128), 128)
        tm = _choose_tile(M, (128, 64, 32, 16, 8), 8)
        td = _choose_tile(D, (128,), 128)

    M_pad, N_pad, D_pad = _round_up(M, tm), _round_up(N, tn), _round_up(D, td)

    # v7x has 2 TensorCores: keep at least one parallel grid axis with extent >= 2.
    if B * (M_pad // tm) * (N_pad // tn) == 1:
        if tn >= 256:
            tn //= 2
        elif tm >= 16:
            tm //= 2

    itemsize = jnp.dtype(x2.dtype).itemsize
    x2_full_d = (D_pad // td > 1) and (2 * tm * D_pad * itemsize <= _X2_FULL_D_BUDGET)

    # Wrapper-side zero padding keeps output tiles lane-dense (no masked stores).
    x1_p = jnp.pad(x1, ((0, 0), (0, N_pad - N), (0, D_pad - D)))
    x2_p = jnp.pad(x2, ((0, 0), (0, M_pad - M), (0, D_pad - D)))

    grid = (B, M_pad // tm, N_pad // tn, D_pad // td)

    if x2_full_d:
        # Full-D block, independent of j and k -> Pallas elides the re-DMA across
        # the N grid axis and the D chunks; the kernel slices the td chunk.
        x2_spec = pl.BlockSpec((1, tm, D_pad), lambda b, i, j, k: (b, i, 0))
    else:
        x2_spec = pl.BlockSpec((1, tm, td), lambda b, i, j, k: (b, i, k))
    out_spec = pl.BlockSpec((1, tm, tn), lambda b, i, j, k: (b, i, j))
    cparams = pltpu.CompilerParams(
        dimension_semantics=("parallel", "parallel", "parallel", "arbitrary"),
        vmem_limit_bytes=_VMEM_LIMIT)

    if p == 2.0:
        # Hoisted row statistics (computed once, in f32, by plain XLA).
        x1f = x1_p.astype(jnp.float32)
        x2f = x2_p.astype(jnp.float32)
        s1 = jnp.sum(x1f * x1f, axis=-1) + (2.0 * _EPS) * jnp.sum(x1f, axis=-1)
        s2 = jnp.sum(x2f * x2f, axis=-1) - (2.0 * _EPS) * jnp.sum(x2f, axis=-1)
        s1 = s1.reshape(B, 1, N_pad)
        s2 = s2.reshape(B, M_pad, 1)

        kernel = functools.partial(_pnorm_p2_kernel, td=td, x2_full_d=x2_full_d,
                                   d_eps_sq=float(D) * (_EPS * _EPS))
        out = pl.pallas_call(
            kernel,
            out_shape=jax.ShapeDtypeStruct((B, M_pad, N_pad), out_dtype),
            grid_spec=pltpu.PrefetchScalarGridSpec(
                num_scalar_prefetch=0,
                grid=grid,
                in_specs=[
                    pl.BlockSpec((1, tn, td), lambda b, i, j, k: (b, j, k)),  # x1
                    x2_spec,                                                   # x2
                    pl.BlockSpec((1, 1, tn), lambda b, i, j, k: (b, 0, j)),   # s1
                    pl.BlockSpec((1, tm, 1), lambda b, i, j, k: (b, i, 0)),   # s2
                ],
                out_specs=out_spec,
                scratch_shapes=[pltpu.VMEM((1, tm, tn), jnp.float32)]),
            compiler_params=cparams,
        )(x1_p, x2_p, s1, s2)
    else:
        # x1 transposed so the reduced axis D lands on sublanes inside the kernel.
        x1t_p = jnp.swapaxes(x1_p, 1, 2)              # (B, D_pad, N_pad)
        d_pad_corr = float(D_pad - D) * (_EPS ** p)

        kernel = functools.partial(_pnorm_general_kernel, p=p, td=td,
                                   x2_full_d=x2_full_d, d_pad_corr=d_pad_corr)
        out = pl.pallas_call(
            kernel,
            out_shape=jax.ShapeDtypeStruct((B, M_pad, N_pad), out_dtype),
            grid_spec=pltpu.PrefetchScalarGridSpec(
                num_scalar_prefetch=0,
                grid=grid,
                in_specs=[
                    pl.BlockSpec((1, td, tn), lambda b, i, j, k: (b, k, j)),  # x1^T
                    x2_spec,                                                   # x2
                ],
                out_specs=out_spec,
                scratch_shapes=[pltpu.VMEM((1, tm, tn), jnp.float32)]),
            compiler_params=cparams,
        )(x1t_p, x2_p)

    out = out[:, :M, :N]
    return out[0] if squeeze_batch else out


def _reference(x1, x2, p=1.0):
    """Pure-JAX reference mirroring the PyTorch module."""
    if x1.ndim == 2:
        diff = x1[None, :, :] - x2[:, None, :] + _EPS           # (M, N, D)
    else:
        diff = x1[:, None, :, :] - x2[:, :, None, :] + _EPS     # (B, M, N, D)
    return jnp.sum(jnp.abs(diff) ** p, axis=-1) ** (1.0 / p)


if __name__ == "__main__":
    key = jax.random.PRNGKey(0)
    keys = jax.random.split(key, 8)

    # --- 3D (batched), p = 1 (module default), tiny shapes ---
    B, N, M, D = 2, 8, 16, 32
    x1_3d = jax.random.normal(keys[0], (B, N, D), dtype=jnp.float32)
    x2_3d = jax.random.normal(keys[1], (B, M, D), dtype=jnp.float32)
    out_3d = jax.block_until_ready(pairwise_pnorm(x1_3d, x2_3d, p=1.0))
    assert out_3d.shape == (B, M, N)
    assert jnp.allclose(out_3d, _reference(x1_3d, x2_3d, p=1.0), atol=1e-4, rtol=1e-4)

    # --- 2D, p = 1, ragged M (wrapper-side padding + output slice) ---
    x1_2d = jax.random.normal(keys[2], (8, D), dtype=jnp.float32)
    x2_2d = jax.random.normal(keys[3], (10, D), dtype=jnp.float32)
    out_2d = jax.block_until_ready(pairwise_pnorm(x1_2d, x2_2d, p=1.0))
    assert out_2d.shape == (10, 8)
    assert jnp.allclose(out_2d, _reference(x1_2d, x2_2d, p=1.0), atol=1e-4, rtol=1e-4)

    # --- p = 1 with real tiling: multiple N / D / M grid steps + full-D x2 block ---
    x1_t = jax.random.normal(keys[4], (1, 384, 256), dtype=jnp.float32)
    x2_t = jax.random.normal(keys[5], (1, 20, 256), dtype=jnp.float32)
    out_t = jax.block_until_ready(pairwise_pnorm(x1_t, x2_t, p=1.0))
    assert jnp.allclose(out_t, _reference(x1_t, x2_t, p=1.0), atol=1e-3, rtol=1e-4)

    # --- p = 2: MXU Gram-matrix path with hoisted row stats and D chunking ---
    x1_p2 = jax.random.normal(keys[6], (1, 256, 384), dtype=jnp.float32)
    x2_p2 = jax.random.normal(keys[7], (1, 64, 384), dtype=jnp.float32)
    out_p2 = jax.block_until_ready(pairwise_pnorm(x1_p2, x2_p2, p=2.0))
    assert jnp.allclose(out_p2, _reference(x1_p2, x2_p2, p=2.0), atol=1e-3, rtol=1e-3)

    # --- p = 3: small-integer-power VALU path ---
    out_p3 = jax.block_until_ready(pairwise_pnorm(x1_3d, x2_3d, p=3.0))
    assert jnp.allclose(out_p3, _reference(x1_3d, x2_3d, p=3.0), atol=1e-4, rtol=1e-4)

    # --- p = 1.5: generic fractional-p (EUP pow) path ---
    out_p15 = jax.block_until_ready(pairwise_pnorm(x1_3d, x2_3d, p=1.5))
    assert jnp.allclose(out_p15, _reference(x1_3d, x2_3d, p=1.5), atol=1e-4, rtol=1e-4)

    print("KERNEL_OK")
</pallas_src>

<mosaic_0001>
module attributes {stable_mosaic.version = 11 : i64} {
  func.func @_pnorm_general_kernel(%arg0: i32, %arg1: i32, %arg2: i32, %arg3: i32, %arg4: memref<1x128x128xf32, #tpu.memory_space<vmem>>, %arg5: memref<1x16x128xf32, #tpu.memory_space<vmem>>, %arg6: memref<1x16x128xf32, #tpu.memory_space<vmem>>, %arg7: memref<1x16x128xf32, #tpu.memory_space<vmem>>) attributes {dimension_semantics = [#tpu.dimension_semantics<parallel>, #tpu.dimension_semantics<parallel>, #tpu.dimension_semantics<parallel>, #tpu.dimension_semantics<arbitrary>], iteration_bounds = array<i64: 2, 1, 1, 1>, scalar_prefetch = 0 : i64, scratch_operands = 1 : i64, tpu.core_type = #tpu.core_type<tc>, window_params = [{transform_indices = @transform_0, window_bounds = array<i64: 1, 128, 128>}, {transform_indices = @transform_1, window_bounds = array<i64: 1, 16, 128>}, {transform_indices = @transform_2, window_bounds = array<i64: 1, 16, 128>}]} {
    %c0_i32 = arith.constant 0 : i32
    %0 = arith.cmpi eq, %arg3, %c0_i32 : i32
    %1 = arith.extui %0 : i1 to i32
    %c0_i32_0 = arith.constant 0 : i32
    %2 = arith.cmpi ne, %1, %c0_i32_0 : i32
    scf.if %2 {
      %cst_21 = arith.constant 0.000000e+00 : f32
      %49 = vector.broadcast %cst_21 : f32 to vector<1x16x128xf32>
      %c0_22 = arith.constant 0 : index
      %c0_23 = arith.constant 0 : index
      %c0_24 = arith.constant 0 : index
      %50 = vector.load %arg7[%c0_22, %c0_23, %c0_24] : memref<1x16x128xf32, #tpu.memory_space<vmem>>, vector<1x16x128xf32>
      tpu.vector_store %arg7[%c0_22, %c0_23, %c0_24], %49 {strides = array<i32>} : memref<1x16x128xf32, #tpu.memory_space<vmem>>, vector<1x16x128xf32>,
    } else {
    }
    %c0 = arith.constant 0 : index
    %c0_1 = arith.constant 0 : index
    %c0_2 = arith.constant 0 : index
    %3 = vector.load %arg4[%c0, %c0_1, %c0_2] : memref<1x128x128xf32, #tpu.memory_space<vmem>>, vector<1x128x128xf32>
    %4 = vector.shape_cast %3 : vector<1x128x128xf32> to vector<128x128xf32>
    %cst = arith.constant 9.99999997E-7 : f32
    %5 = vector.broadcast %cst : f32 to vector<128x128xf32>
    %6 = arith.addf %4, %5 : vector<128x128xf32>
    %7 = vector.shape_cast %6 : vector<128x128xf32> to vector<1x128x128xf32>
    %c0_i32_3 = arith.constant 0 : i32
    %c8_i32 = arith.constant 8 : i32
    %8 = arith.muli %c0_i32_3, %c8_i32 : i32
    %9 = tpu.assume_multiple %8, 8 : i32
    %c0_4 = arith.constant 0 : index
    %10 = arith.index_cast %9 : i32 to index
    %c0_5 = arith.constant 0 : index
    %11 = vector.load %arg5[%c0_4, %10, %c0_5] : memref<1x16x128xf32, #tpu.memory_space<vmem>>, vector<1x8x128xf32>
    %12 = vector.shape_cast %11 : vector<1x8x128xf32> to vector<8x128xf32>
    %13 = vector.shape_cast %12 : vector<8x128xf32> to vector<8x128x1xf32>
    %14 = vector.broadcast %7 : vector<1x128x128xf32> to vector<8x128x128xf32>
    %15 = vector.broadcast %13 : vector<8x128x1xf32> to vector<8x128x128xf32>
    %16 = arith.subf %14, %15 : vector<8x128x128xf32>
    %17 = math.absf %16 : vector<8x128x128xf32>
    %c0_6 = arith.constant 0 : index
    %18 = arith.index_cast %9 : i32 to index
    %c0_7 = arith.constant 0 : index
    %19 = vector.load %arg7[%c0_6, %18, %c0_7] : memref<1x16x128xf32, #tpu.memory_space<vmem>>, vector<1x8x128xf32>
    %20 = vector.shape_cast %19 : vector<1x8x128xf32> to vector<8x128xf32>
    %cst_8 = arith.constant dense<0.000000e+00> : vector<8x128xf32>
    %21 = vector.multi_reduction <add>, %17, %cst_8 [1] : vector<8x128x128xf32> to vector<8x128xf32>
    %22 = arith.addf %20, %21 : vector<8x128xf32>
    %c0_9 = arith.constant 0 : index
    %23 = arith.index_cast %9 : i32 to index
    %c0_10 = arith.constant 0 : index
    %24 = vector.load %arg7[%c0_9, %23, %c0_10] : memref<1x16x128xf32, #tpu.memory_space<vmem>>, vector<1x8x128xf32>
    %25 = vector.shape_cast %24 : vector<1x8x128xf32> to vector<8x128xf32>
    %26 = vector.shape_cast %22 : vector<8x128xf32> to vector<1x8x128xf32>
    tpu.vector_store %arg7[%c0_9, %23, %c0_10], %26 {strides = array<i32>} : memref<1x16x128xf32, #tpu.memory_space<vmem>>, vector<1x8x128xf32>,
    %c1_i32 = arith.constant 1 : i32
    %c8_i32_11 = arith.constant 8 : i32
    %27 = arith.muli %c1_i32, %c8_i32_11 : i32
    %28 = tpu.assume_multiple %27, 8 : i32
    %c0_12 = arith.constant 0 : index
    %29 = arith.index_cast %28 : i32 to index
    %c0_13 = arith.constant 0 : index
    %30 = vector.load %arg5[%c0_12, %29, %c0_13] : memref<1x16x128xf32, #tpu.memory_space<vmem>>, vector<1x8x128xf32>
    %31 = vector.shape_cast %30 : vector<1x8x128xf32> to vector<8x128xf32>
    %32 = vector.shape_cast %31 : vector<8x128xf32> to vector<8x128x1xf32>
    %33 = vector.broadcast %7 : vector<1x128x128xf32> to vector<8x128x128xf32>
    %34 = vector.broadcast %32 : vector<8x128x1xf32> to vector<8x128x128xf32>
    %35 = arith.subf %33, %34 : vector<8x128x128xf32>
    %36 = math.absf %35 : vector<8x128x128xf32>
    %c0_14 = arith.constant 0 : index
    %37 = arith.index_cast %28 : i32 to index
    %c0_15 = arith.constant 0 : index
    %38 = vector.load %arg7[%c0_14, %37, %c0_15] : memref<1x16x128xf32, #tpu.memory_space<vmem>>, vector<1x8x128xf32>
    %39 = vector.shape_cast %38 : vector<1x8x128xf32> to vector<8x128xf32>
    %cst_16 = arith.constant dense<0.000000e+00> : vector<8x128xf32>
    %40 = vector.multi_reduction <add>, %36, %cst_16 [1] : vector<8x128x128xf32> to vector<8x128xf32>
    %41 = arith.addf %39, %40 : vector<8x128xf32>
    %c0_17 = arith.constant 0 : index
    %42 = arith.index_cast %28 : i32 to index
    %c0_18 = arith.constant 0 : index
    %43 = vector.load %arg7[%c0_17, %42, %c0_18] : memref<1x16x128xf32, #tpu.memory_space<vmem>>, vector<1x8x128xf32>
    %44 = vector.shape_cast %43 : vector<1x8x128xf32> to vector<8x128xf32>
    %45 = vector.shape_cast %41 : vector<8x128xf32> to vector<1x8x128xf32>
    tpu.vector_store %arg7[%c0_17, %42, %c0_18], %45 {strides = array<i32>} : memref<1x16x128xf32, #tpu.memory_space<vmem>>, vector<1x8x128xf32>,
    %c2_i32 = arith.constant 2 : i32
    %c0_i32_19 = arith.constant 0 : i32
    %46 = arith.cmpi eq, %arg3, %c0_i32_19 : i32
    %47 = arith.extui %46 : i1 to i32
    %c0_i32_20 = arith.constant 0 : i32
    %48 = arith.cmpi ne, %47, %c0_i32_20 : i32
    scf.if %48 {
      %c0_21 = arith.constant 0 : index
      %c0_22 = arith.constant 0 : index
      %c0_23 = arith.constant 0 : index
      %49 = vector.load %arg7[%c0_21, %c0_22, %c0_23] : memref<1x16x128xf32, #tpu.memory_space<vmem>>, vector<1x16x128xf32>
      %50 = vector.shape_cast %49 : vector<1x16x128xf32> to vector<16x128xf32>
      %cst_24 = arith.constant 9.600000e-05 : f32
      %51 = vector.broadcast %cst_24 : f32 to vector<16x128xf32>
      %52 = arith.subf %50, %51 : vector<16x128xf32>
      %c0_25 = arith.constant 0 : index
      %c0_26 = arith.constant 0 : index
      %c0_27 = arith.constant 0 : index
      %53 = vector.load %arg6[%c0_25, %c0_26, %c0_27] : memref<1x16x128xf32, #tpu.memory_space<vmem>>, vector<1x16x128xf32>
      %54 = vector.shape_cast %53 : vector<1x16x128xf32> to vector<16x128xf32>
      %55 = vector.shape_cast %52 : vector<16x128xf32> to vector<1x16x128xf32>
      tpu.vector_store %arg6[%c0_25, %c0_26, %c0_27], %55 {strides = array<i32>} : memref<1x16x128xf32, #tpu.memory_space<vmem>>, vector<1x16x128xf32>,
    } else {
    }
    return
  }
  func.func @transform_0(%arg0: i32, %arg1: i32, %arg2: i32, %arg3: i32) -> (i32, i32, i32) {
    %c0_i32 = arith.constant 0 : i32
    return %arg0, %arg3, %arg2 : i32, i32, i32
  }
  func.func @transform_1(%arg0: i32, %arg1: i32, %arg2: i32, %arg3: i32) -> (i32, i32, i32) {
    %c0_i32 = arith.constant 0 : i32
    return %arg0, %arg1, %arg3 : i32, i32, i32
  }
  func.func @transform_2(%arg0: i32, %arg1: i32, %arg2: i32, %arg3: i32) -> (i32, i32, i32) {
    %c0_i32 = arith.constant 0 : i32
    return %arg0, %arg1, %arg2 : i32, i32, i32
  }
}

</mosaic_0001>

<llo_original>
// kernel: tpu_custom_call.1
$region0: #{tpu_custom_call.1}
  #allocation0 [shape = 'u32[]', space=smem, size = 0x4, offset = 0x4, fixed_abs, tag = 'smem constant byte address 0x4 - core index']
  #allocation1 [shape = 'u32[144,128]{1,0:T(1,128)}', space=vmem, size = 0x12000, scoped, tag = 'internal scratch']
  #allocation2 [shape = 'f32[1,16,128]{2,1,0:T(8,128)}', space=vmem, size = 0x2000, scoped, tag = 'scratch operand']
  %s0 = inlined_call_operand.hbm [shape: f32[2,128,128], index: 0, kind: input, shape index: {}]
  %s1 = inlined_call_operand.hbm [shape: f32[2,16,128], index: 1, kind: input, shape index: {}]
  %s2 = inlined_call_operand.hbm [shape: f32[2,16,128], index: 2, kind: output, shape index: {}]
  %s3 = sld [smem:[#allocation0]]
  $region57: #{tpu_custom_call.1} parent=0
    _
  %s5 = ssub.s32 1, %s3
  %s6 = scalar_select 0, %s5, %s3
  $region1: #{tpu_custom_call.1} parent=0
    #allocation3 [shape = 'u8[131072]{0}', space=vmem, size = 0x20000, scoped, tag = 'input window, operand 0']
    #allocation4 [shape = 's32[2]{0}', space=sflag, size = 0x8, scoped, tag = 'scoped memory for tpu_custom_call.1']
    #allocation5 [shape = 's32[2]{0}', space=sflag, size = 0x8, scoped, tag = 'scoped memory for tpu_custom_call.1']
    #allocation6 [shape = 'u8[16384]{0}', space=vmem, size = 0x4000, scoped, tag = 'input window, operand 1']
    #allocation7 [shape = 's32[2]{0}', space=sflag, size = 0x8, scoped, tag = 'scoped memory for tpu_custom_call.1']
    #allocation8 [shape = 'u8[16384]{0}', space=vmem, size = 0x4000, scoped, tag = 'output window, operand 0']
    %7 = vsyncpa [#allocation4], 0
    %s8 = scalar_lea.sflag [#allocation4], 1
    %9 = vsyncpa %s8, 0
    %10 = vsyncpa [#allocation7], 0
    %s11 = scalar_lea.sflag [#allocation7], 1
    %12 = vsyncpa %s11, 0
    %13 = vsyncpa [#allocation5], 0
    %s14 = scalar_lea.sflag [#allocation5], 1
    %15 = vsyncpa %s14, 0
    loop: start=0, step=1, limit=4
    $region2: #{tpu_custom_call.1} parent=1 // loop_pre_header
      _
    $region3: #{tpu_custom_call.1} parent=1 // loop_header
      %s17 = sphi 0, %s21
      %p18 = scmp.ge.s32.totalorder %s17, 4
      %s24 = sphi 0, %s50
      %s25 = sphi 0, %s46
      %s26 = sphi 0, %s42
      %s27 = sphi 0, %s38
      %s28 = sphi 0, %s24
      %s29 = sphi 0, %s25
      %s30 = sphi 0, %s26
      %s31 = sphi 0, %s27
      %s32 = sphi 0, %s28
      %s33 = sphi 0, %s29
      %s34 = sphi 0, %s30
      %s35 = sphi 0, %s31
      %s57 = sphi 0, %s59
      %s60 = sphi 0, %s57
      %s61 = sphi 0, %s60
      %s77 = sphi 0, %s61
      %s87 = sphi 0, %s89
      %s90 = sphi 0, %s87
      %s91 = sphi 0, %s90
      %s107 = sphi 0, %s91
      %s117 = sphi 0, %s119
      %s120 = sphi 0, %s117
      %s121 = sphi 0, %s120
      %s137 = sphi 0, %s121
    $region4: #{tpu_custom_call.1} parent=1 // loop_header_branch
      %20 = sbr.rel (%p18) target = $region8
    $region5: #{tpu_custom_call.1} parent=1 // loop_body
      %s22 = ssub.s32 %s17, 1
      %s23 = ssub.s32 %s17, 2
      %s36 = sadd.s32 1, %s27
      %p37 = scmp.ge.s32.totalorder %s36, 1
      %s38 = scalar_select %p37, 0, %s36
      %s39 = sadd.s32 1, %s26
      %s40 = scalar_select %p37, %s39, %s26
      %p41 = scmp.ge.s32.totalorder %s40, 1
      %s42 = scalar_select %p41, 0, %s40
      %s43 = sadd.s32 1, %s25
      %s44 = scalar_select %p41, %s43, %s25
      %p45 = scmp.ge.s32.totalorder %s44, 1
      %s46 = scalar_select %p45, 0, %s44
      %s47 = sadd.s32 1, %s24
      %s48 = scalar_select %p45, %s47, %s24
      %p49 = scmp.ge.s32.totalorder %s48, 2
      %s50 = scalar_select %p49, 0, %s48
      %s51 = ssub.s32 %s24, %s50
      %s52 = ssub.s32 %s27, %s38
      %s53 = sor.u32 %s51, %s52
      %s54 = ssub.s32 %s26, %s42
      %s55 = sor.u32 %s53, %s54
      %p56 = scmp.eq.s32.totalorder %s55, 0
      %s58 = sadd.s32 %s57, 1
      %s59 = scalar_select %p56, %s57, %s58
      %p62 = pneg %p56
      %p63 = scmp.eq.s32.totalorder %s17, 1
      %p64 = por %p62, %p63
      %p65 = scmp.ne.s32.totalorder %s57, %s60
      %p66 = scmp.eq.s32.totalorder %s17, 0
      %p67 = por %p65, %p66
      %p68 = scmp.ne.s32.totalorder %s57, %s60
      %p69 = scmp.eq.s32.totalorder %s22, 1
      %p70 = por %p68, %p69
      %p71 = scmp.ne.s32.totalorder %s60, %s61
      %p72 = scmp.eq.s32.totalorder %s22, 0
      %p73 = por %p71, %p72
      %p74 = scmp.ne.s32.totalorder %s60, %s61
      %p75 = scmp.eq.s32.totalorder %s23, 1
      %p76 = por %p74, %p75
      %p78 = scmp.ne.s32.totalorder %s61, %s77
      %p79 = scmp.eq.s32.totalorder %s23, 0
      %p80 = por %p78, %p79
      %s81 = ssub.s32 %s24, %s50
      %s82 = ssub.s32 %s25, %s46
      %s83 = sor.u32 %s81, %s82
      %s84 = ssub.s32 %s27, %s38
      %s85 = sor.u32 %s83, %s84
      %p86 = scmp.eq.s32.totalorder %s85, 0
      %s88 = sadd.s32 %s87, 1
      %s89 = scalar_select %p86, %s87, %s88
      %p92 = pneg %p86
      %p93 = scmp.eq.s32.totalorder %s17, 1
      %p94 = por %p92, %p93
      %p95 = scmp.ne.s32.totalorder %s87, %s90
      %p96 = scmp.eq.s32.totalorder %s17, 0
      %p97 = por %p95, %p96
      %p98 = scmp.ne.s32.totalorder %s87, %s90
      %p99 = scmp.eq.s32.totalorder %s22, 1
      %p100 = por %p98, %p99
      %p101 = scmp.ne.s32.totalorder %s90, %s91
      %p102 = scmp.eq.s32.totalorder %s22, 0
      %p103 = por %p101, %p102
      %p104 = scmp.ne.s32.totalorder %s90, %s91
      %p105 = scmp.eq.s32.totalorder %s23, 1
      %p106 = por %p104, %p105
      %p108 = scmp.ne.s32.totalorder %s91, %s107
      %p109 = scmp.eq.s32.totalorder %s23, 0
      %p110 = por %p108, %p109
      %s111 = ssub.s32 %s24, %s50
      %s112 = ssub.s32 %s25, %s46
      %s113 = sor.u32 %s111, %s112
      %s114 = ssub.s32 %s26, %s42
      %s115 = sor.u32 %s113, %s114
      %p116 = scmp.eq.s32.totalorder %s115, 0
      %s118 = sadd.s32 %s117, 1
      %s119 = scalar_select %p116, %s117, %s118
      %p122 = pneg %p116
      %p123 = scmp.eq.s32.totalorder %s17, 1
      %p124 = por %p122, %p123
      %p125 = scmp.ne.s32.totalorder %s117, %s120
      %p126 = scmp.eq.s32.totalorder %s17, 0
      %p127 = por %p125, %p126
      %p128 = scmp.ne.s32.totalorder %s117, %s120
      %p129 = scmp.eq.s32.totalorder %s22, 1
      %p130 = por %p128, %p129
      %p131 = scmp.ne.s32.totalorder %s120, %s121
      %p132 = scmp.eq.s32.totalorder %s22, 0
      %p133 = por %p131, %p132
      %p134 = scmp.ne.s32.totalorder %s120, %s121
      %p135 = scmp.eq.s32.totalorder %s23, 1
      %p136 = por %p134, %p135
      %p138 = scmp.ne.s32.totalorder %s121, %s137
      %p139 = scmp.eq.s32.totalorder %s23, 0
      %p140 = por %p138, %p139
      %p141 = scmp.le.s32.totalorder 1, %s17
      %p142 = scmp.lt.s32.totalorder %s17, 3
      %p143 = pnand %p141, %p142
      %p144 = pneg %p143
      // Predicated region
      $region9: #{tpu_custom_call.1} parent=5 // pred_check
        _
      $region10: #{tpu_custom_call.1} parent=5 // pred_check_branch
        %146 = sbr.rel (%p143) target = $region12
      $region11: #{tpu_custom_call.1} parent=5 // pred_region
        %s147 = ssub.s32 %s17, 1
      $region12: #{tpu_custom_call.1} parent=5 // pred_fallthru
        _
      %p148 = scmp.lt.s32.totalorder %s17, 2
      // Predicated region
      $region13: #{tpu_custom_call.1} parent=5 // pred_check
        %p149 = pneg %p148
      $region14: #{tpu_custom_call.1} parent=5 // pred_check_branch
        %151 = sbr.rel (%p149) target = $region16
      $region15: #{tpu_custom_call.1} parent=5 // pred_region
        // Predicated region
        $region17: #{tpu_custom_call.1} parent=15 // pred_check
          %p152 = pneg %p67
        $region18: #{tpu_custom_call.1} parent=15 // pred_check_branch
          %154 = sbr.rel (%p152) target = $region20
        $region19: #{tpu_custom_call.1} parent=15 // pred_region
          %s155 = sand.u32 %s57, 1
          %s156 = scalar_lea.sflag [#allocation4], %s155
          %s157 = sand.u32 %s57, 1
          %s158 = smul.addr %s157, 128
          %s159 = scalar_lea.vmem [#allocation3], %s158
          %s160 = smul.u32 16, %s27
          %s162 = ssub.s32 2048, 2048
          %163 = vsyncadd %s156, %s162
          %s164 = sadd.s32 %s26, %s160
          %s165 = smul.addr %s24, 16
          %s166 = sadd.s32 %s164, %s165
          %s167 = smul.addr %s166, 128
          %s168 = scalar_lea.hbm %s0, %s167
          %s169 = sshll.u32 %s159, 4
          %s170 = int_to_ptr.vmem [resolvable:$true] %s169
          %175 = dma.hbm_to_vmem [thread:$0]  %s168, 2048, %s170, %s156, 128, 128, 8
        $region20: #{tpu_custom_call.1} parent=15 // pred_fallthru
          _
        // Predicated region
        $region21: #{tpu_custom_call.1} parent=15 // pred_check
          %p176 = pneg %p97
        $region22: #{tpu_custom_call.1} parent=15 // pred_check_branch
          %178 = sbr.rel (%p176) target = $region24
        $region23: #{tpu_custom_call.1} parent=15 // pred_region
          %s179 = sand.u32 %s87, 1
          %s180 = scalar_lea.sflag [#allocation7], %s179
          %s181 = sand.u32 %s87, 1
          %s182 = smul.addr %s181, 16
          %s183 = scalar_lea.vmem [#allocation6], %s182
          %s184 = smul.u32 2, %s25
          %s186 = ssub.s32 256, 256
          %187 = vsyncadd %s180, %s186
          %s188 = sadd.s32 %s27, %s184
          %s189 = smul.addr %s24, 2
          %s190 = sadd.s32 %s188, %s189
          %s191 = smul.addr %s190, 128
          %s192 = scalar_lea.hbm %s1, %s191
          %s193 = sshll.u32 %s183, 4
          %s194 = int_to_ptr.vmem [resolvable:$true] %s193
          %199 = dma.hbm_to_vmem [thread:$0]  %s192, 256, %s194, %s180, 128, 128, 8
        $region24: #{tpu_custom_call.1} parent=15 // pred_fallthru
          _
      $region16: #{tpu_custom_call.1} parent=5 // pred_fallthru
        _
      %p200 = scmp.le.s32.totalorder 1, %s17
      %p201 = scmp.lt.s32.totalorder %s17, 3
      %p202 = pnand %p200, %p201
      %p203 = pneg %p202
      // Predicated region
      $region25: #{tpu_custom_call.1} parent=5 // pred_check
        _
      $region26: #{tpu_custom_call.1} parent=5 // pred_check_branch
        %205 = sbr.rel (%p202) target = $region28
      $region27: #{tpu_custom_call.1} parent=5 // pred_region
        %s206 = ssub.s32 %s17, 1
        %s207 = sand.u32 %s60, 1
        %s208 = scalar_lea.sflag [#allocation4], %s207
        %s209 = sand.u32 %s60, 1
        %s210 = smul.addr %s209, 128
        %s211 = scalar_lea.vmem [#allocation3], %s210
        // Predicated region
        $region29: #{tpu_custom_call.1} parent=27 // pred_check
          %p212 = pneg %p73
        $region30: #{tpu_custom_call.1} parent=27 // pred_check_branch
          %214 = sbr.rel (%p212) target = $region32
        $region31: #{tpu_custom_call.1} parent=27 // pred_region
          %215 = dma.done %s208, 2048
        $region32: #{tpu_custom_call.1} parent=27 // pred_fallthru
          _
        %s216 = sand.u32 %s90, 1
        %s217 = scalar_lea.sflag [#allocation7], %s216
        %s218 = sand.u32 %s90, 1
        %s219 = smul.addr %s218, 16
        %s220 = scalar_lea.vmem [#allocation6], %s219
        // Predicated region
        $region33: #{tpu_custom_call.1} parent=27 // pred_check
          %p221 = pneg %p103
        $region34: #{tpu_custom_call.1} parent=27 // pred_check_branch
          %223 = sbr.rel (%p221) target = $region36
        $region35: #{tpu_custom_call.1} parent=27 // pred_region
          %224 = dma.done %s217, 256
        $region36: #{tpu_custom_call.1} parent=27 // pred_fallthru
          _
        %s225 = sand.u32 %s60, 1
        %s226 = scalar_lea.sflag [#allocation4], %s225
        %s227 = sand.u32 %s60, 1
        %s228 = smul.addr %s227, 128
        %s229 = scalar_lea.vmem [#allocation3], %s228
        %p230 = pneg %p73
        %p231 = pneg %p70
        %s232 = sand.u32 %s90, 1
        %s233 = scalar_lea.sflag [#allocation7], %s232
        %s234 = sand.u32 %s90, 1
        %s235 = smul.addr %s234, 16
        %s236 = scalar_lea.vmem [#allocation6], %s235
        %p237 = pneg %p103
        %p238 = pneg %p100
        %p239 = pneg %p133
        %p240 = pneg %p130
        %s241 = sand.u32 %s120, 1
        %s242 = scalar_lea.sflag [#allocation5], %s241
        %s243 = sand.u32 %s120, 1
        %s244 = smul.addr %s243, 16
        %s245 = scalar_lea.vmem [#allocation8], %s244
        %s246 = smul.u32 16, %s31
        %s247 = smul.u32 2, %s29
        %s248 = smul.u32 2, %s29
        %p249 = scmp.eq.s32.totalorder %s31, 0
        // Predicated region
        $region37: #{tpu_custom_call.1} parent=27 // pred_check
          %p250 = pneg %p249
        $region38: #{tpu_custom_call.1} parent=27 // pred_check_branch
          %252 = sbr.rel (%p250) target = $region40
        $region39: #{tpu_custom_call.1} parent=27 // pred_region
          %253 = vst [vmem:[#allocation2] sm:$0xff] 0.0
          %254 = vst [vmem:[#allocation2 + $0x8] sm:$0xff] 0.0
        $region40: #{tpu_custom_call.1} parent=27 // pred_fallthru
          _
        %v255 = vld [vmem:[%s211] sm:$0xff]
        %v256 = vld [vmem:[%s211 + $0x8] sm:$0xff]
        %v257 = vld [vmem:[%s211 + $0x10] sm:$0xff]
        %v258 = vld [vmem:[%s211 + $0x18] sm:$0xff]
        %v259 = vld [vmem:[%s211 + $0x20] sm:$0xff]
        %v260 = vld [vmem:[%s211 + $0x28] sm:$0xff]
        %v261 = vld [vmem:[%s211 + $0x30] sm:$0xff]
        %v262 = vld [vmem:[%s211 + $0x38] sm:$0xff]
        %v263 = vld [vmem:[%s211 + $0x40] sm:$0xff]
        %v264 = vld [vmem:[%s211 + $0x48] sm:$0xff]
        %v265 = vld [vmem:[%s211 + $0x50] sm:$0xff]
        %v266 = vld [vmem:[%s211 + $0x58] sm:$0xff]
        %v267 = vld [vmem:[%s211 + $0x60] sm:$0xff]
        %v268 = vld [vmem:[%s211 + $0x68] sm:$0xff]
        %v269 = vld [vmem:[%s211 + $0x70] sm:$0xff]
        %v270 = vld [vmem:[%s211 + $0x78] sm:$0xff]
        %v271 = vadd.f32 %v255, 1e-06
        %v272 = vadd.f32 %v256, 1e-06
        %v273 = vadd.f32 %v257, 1e-06
        %v274 = vadd.f32 %v258, 1e-06
        %v275 = vadd.f32 %v259, 1e-06
        %v276 = vadd.f32 %v260, 1e-06
        %v277 = vadd.f32 %v261, 1e-06
        %v278 = vadd.f32 %v262, 1e-06
        %v279 = vadd.f32 %v263, 1e-06
        %v280 = vadd.f32 %v264, 1e-06
        %v281 = vadd.f32 %v265, 1e-06
        %v282 = vadd.f32 %v266, 1e-06
        %v283 = vadd.f32 %v267, 1e-06
        %v284 = vadd.f32 %v268, 1e-06
        %v285 = vadd.f32 %v269, 1e-06
        %v286 = vadd.f32 %v270, 1e-06
        %v287 = vld [vmem:[%s220] sm:$0xff]
        %v288 = vlaneseq
        %v289 = vshrl.u32 %v288, 7
        %v290 = vsub.s32 0, %v289
        %v291 = vrot.slane %v287, %v290
        %293 = vbcast.lane.b32.xlu0 %v291, 256
        %v294 = vpop.permute.xlu0 %293
        %s296 = sor.u32 256, 8
        %297 = vbcast.lane.b32.xlu0 %v291, %s296
        %v298 = vpop.permute.xlu0 %297
        %s300 = sor.u32 256, 16
        %301 = vbcast.lane.b32.xlu0 %v291, %s300
        %v302 = vpop.permute.xlu0 %301
        %s304 = sor.u32 256, 24
        %305 = vbcast.lane.b32.xlu0 %v291, %s304
        %v306 = vpop.permute.xlu0 %305
        %s308 = sor.u32 256, 32
        %309 = vbcast.lane.b32.xlu0 %v291, %s308
        %v310 = vpop.permute.xlu0 %309
        %s312 = sor.u32 256, 40
        %313 = vbcast.lane.b32.xlu0 %v291, %s312
        %v314 = vpop.permute.xlu0 %313
        %s316 = sor.u32 256, 48
        %317 = vbcast.lane.b32.xlu0 %v291, %s316
        %v318 = vpop.permute.xlu0 %317
        %s320 = sor.u32 256, 56
        %321 = vbcast.lane.b32.xlu0 %v291, %s320
        %v322 = vpop.permute.xlu0 %321
        %s324 = sor.u32 256, 64
        %325 = vbcast.lane.b32.xlu0 %v291, %s324
        %v326 = vpop.permute.xlu0 %325
        %s328 = sor.u32 256, 72
        %329 = vbcast.lane.b32.xlu0 %v291, %s328
        %v330 = vpop.permute.xlu0 %329
        %s332 = sor.u32 256, 80
        %333 = vbcast.lane.b32.xlu0 %v291, %s332
        %v334 = vpop.permute.xlu0 %333
        %s336 = sor.u32 256, 88
        %337 = vbcast.lane.b32.xlu0 %v291, %s336
        %v338 = vpop.permute.xlu0 %337
        %s340 = sor.u32 256, 96
        %341 = vbcast.lane.b32.xlu0 %v291, %s340
        %v342 = vpop.permute.xlu0 %341
        %s344 = sor.u32 256, 104
        %345 = vbcast.lane.b32.xlu0 %v291, %s344
        %v346 = vpop.permute.xlu0 %345
        %s348 = sor.u32 256, 112
        %349 = vbcast.lane.b32.xlu0 %v291, %s348
        %v350 = vpop.permute.xlu0 %349
        %s352 = sor.u32 256, 120
        %353 = vbcast.lane.b32.xlu0 %v291, %s352
        %v354 = vpop.permute.xlu0 %353
        %v355 = vlaneseq
        %v356 = vshrl.u32 %v355, 7
        %v357 = vsub.s32 1, %v356
        %v358 = vrot.slane %v287, %v357
        %360 = vbcast.lane.b32.xlu0 %v358, 256
        %v361 = vpop.permute.xlu0 %360
        %s363 = sor.u32 256, 8
        %364 = vbcast.lane.b32.xlu0 %v358, %s363
        %v365 = vpop.permute.xlu0 %364
        %s367 = sor.u32 256, 16
        %368 = vbcast.lane.b32.xlu0 %v358, %s367
        %v369 = vpop.permute.xlu0 %368
        %s371 = sor.u32 256, 24
        %372 = vbcast.lane.b32.xlu0 %v358, %s371
        %v373 = vpop.permute.xlu0 %372
        %s375 = sor.u32 256, 32
        %376 = vbcast.lane.b32.xlu0 %v358, %s375
        %v377 = vpop.permute.xlu0 %376
        %s379 = sor.u32 256, 40
        %380 = vbcast.lane.b32.xlu0 %v358, %s379
        %v381 = vpop.permute.xlu0 %380
        %s383 = sor.u32 256, 48
        %384 = vbcast.lane.b32.xlu0 %v358, %s383
        %v385 = vpop.permute.xlu0 %384
        %s387 = sor.u32 256, 56
        %388 = vbcast.lane.b32.xlu0 %v358, %s387
        %v389 = vpop.permute.xlu0 %388
        %s391 = sor.u32 256, 64
        %392 = vbcast.lane.b32.xlu0 %v358, %s391
        %v393 = vpop.permute.xlu0 %392
        %s395 = sor.u32 256, 72
        %396 = vbcast.lane.b32.xlu0 %v358, %s395
        %v397 = vpop.permute.xlu0 %396
        %s399 = sor.u32 256, 80
        %400 = vbcast.lane.b32.xlu0 %v358, %s399
        %v401 = vpop.permute.xlu0 %400
        %s403 = sor.u32 256, 88
        %404 = vbcast.lane.b32.xlu0 %v358, %s403
        %v405 = vpop.permute.xlu0 %404
        %s407 = sor.u32 256, 96
        %408 = vbcast.lane.b32.xlu0 %v358, %s407
        %v409 = vpop.permute.xlu0 %408
        %s411 = sor.u32 256, 104
        %412 = vbcast.lane.b32.xlu0 %v358, %s411
        %v413 = vpop.permute.xlu0 %412
        %s415 = sor.u32 256, 112
        %416 = vbcast.lane.b32.xlu0 %v358, %s415
        %v417 = vpop.permute.xlu0 %416
        %s419 = sor.u32 256, 120
        %420 = vbcast.lane.b32.xlu0 %v358, %s419
        %v421 = vpop.permute.xlu0 %420
        %v422 = vlaneseq
        %v423 = vshrl.u32 %v422, 7
        %v424 = vsub.s32 2, %v423
        %v425 = vrot.slane %v287, %v424
        %427 = vbcast.lane.b32.xlu0 %v425, 256
        %v428 = vpop.permute.xlu0 %427
        %s430 = sor.u32 256, 8
        %431 = vbcast.lane.b32.xlu0 %v425, %s430
        %v432 = vpop.permute.xlu0 %431
        %s434 = sor.u32 256, 16
        %435 = vbcast.lane.b32.xlu0 %v425, %s434
        %v436 = vpop.permute.xlu0 %435
        %s438 = sor.u32 256, 24
        %439 = vbcast.lane.b32.xlu0 %v425, %s438
        %v440 = vpop.permute.xlu0 %439
        %s442 = sor.u32 256, 32
        %443 = vbcast.lane.b32.xlu0 %v425, %s442
        %v444 = vpop.permute.xlu0 %443
        %s446 = sor.u32 256, 40
        %447 = vbcast.lane.b32.xlu0 %v425, %s446
        %v448 = vpop.permute.xlu0 %447
        %s450 = sor.u32 256, 48
        %451 = vbcast.lane.b32.xlu0 %v425, %s450
        %v452 = vpop.permute.xlu0 %451
        %s454 = sor.u32 256, 56
        %455 = vbcast.lane.b32.xlu0 %v425, %s454
        %v456 = vpop.permute.xlu0 %455
        %s458 = sor.u32 256, 64
        %459 = vbcast.lane.b32.xlu0 %v425, %s458
        %v460 = vpop.permute.xlu0 %459
        %s462 = sor.u32 256, 72
        %463 = vbcast.lane.b32.xlu0 %v425, %s462
        %v464 = vpop.permute.xlu0 %463
        %s466 = sor.u32 256, 80
        %467 = vbcast.lane.b32.xlu0 %v425, %s466
        %v468 = vpop.permute.xlu0 %467
        %s470 = sor.u32 256, 88
        %471 = vbcast.lane.b32.xlu0 %v425, %s470
        %v472 = vpop.permute.xlu0 %471
        %s474 = sor.u32 256, 96
        %475 = vbcast.lane.b32.xlu0 %v425, %s474
        %v476 = vpop.permute.xlu0 %475
        %s478 = sor.u32 256, 104
        %479 = vbcast.lane.b32.xlu0 %v425, %s478
        %v480 = vpop.permute.xlu0 %479
        %s482 = sor.u32 256, 112
        %483 = vbcast.lane.b32.xlu0 %v425, %s482
        %v484 = vpop.permute.xlu0 %483
        %s486 = sor.u32 256, 120
        %487 = vbcast.lane.b32.xlu0 %v425, %s486
        %v488 = vpop.permute.xlu0 %487
        %v489 = vlaneseq
        %v490 = vshrl.u32 %v489, 7
        %v491 = vsub.s32 3, %v490
        %v492 = vrot.slane %v287, %v491
        %494 = vbcast.lane.b32.xlu0 %v492, 256
        %v495 = vpop.permute.xlu0 %494
        %s497 = sor.u32 256, 8
        %498 = vbcast.lane.b32.xlu0 %v492, %s497
        %v499 = vpop.permute.xlu0 %498
        %s501 = sor.u32 256, 16
        %502 = vbcast.lane.b32.xlu0 %v492, %s501
        %v503 = vpop.permute.xlu0 %502
        %s505 = sor.u32 256, 24
        %506 = vbcast.lane.b32.xlu0 %v492, %s505
        %v507 = vpop.permute.xlu0 %506
        %s509 = sor.u32 256, 32
        %510 = vbcast.lane.b32.xlu0 %v492, %s509
        %v511 = vpop.permute.xlu0 %510
        %s513 = sor.u32 256, 40
        %514 = vbcast.lane.b32.xlu0 %v492, %s513
        %v515 = vpop.permute.xlu0 %514
        %s517 = sor.u32 256, 48
        %518 = vbcast.lane.b32.xlu0 %v492, %s517
        %v519 = vpop.permute.xlu0 %518
        %s521 = sor.u32 256, 56
        %522 = vbcast.lane.b32.xlu0 %v492, %s521
        %v523 = vpop.permute.xlu0 %522
        %s525 = sor.u32 256, 64
        %526 = vbcast.lane.b32.xlu0 %v492, %s525
        %v527 = vpop.permute.xlu0 %526
        %s529 = sor.u32 256, 72
        %530 = vbcast.lane.b32.xlu0 %v492, %s529
        %v531 = vpop.permute.xlu0 %530
        %s533 = sor.u32 256, 80
        %534 = vbcast.lane.b32.xlu0 %v492, %s533
        %v535 = vpop.permute.xlu0 %534
        %s537 = sor.u32 256, 88
        %538 = vbcast.lane.b32.xlu0 %v492, %s537
        %v539 = vpop.permute.xlu0 %538
        %s541 = sor.u32 256, 96
        %542 = vbcast.lane.b32.xlu0 %v492, %s541
        %v543 = vpop.permute.xlu0 %542
        %s545 = sor.u32 256, 104
        %546 = vbcast.lane.b32.xlu0 %v492, %s545
        %v547 = vpop.permute.xlu0 %546
        %s549 = sor.u32 256, 112
        %550 = vbcast.lane.b32.xlu0 %v492, %s549
        %v551 = vpop.permute.xlu0 %550
        %s553 = sor.u32 256, 120
        %554 = vbcast.lane.b32.xlu0 %v492, %s553
        %v555 = vpop.permute.xlu0 %554
        %v556 = vlaneseq
        %v557 = vshrl.u32 %v556, 7
        %v558 = vsub.s32 4, %v557
        %v559 = vrot.slane %v287, %v558
        %561 = vbcast.lane.b32.xlu0 %v559, 256
        %v562 = vpop.permute.xlu0 %561
        %s564 = sor.u32 256, 8
        %565 = vbcast.lane.b32.xlu0 %v559, %s564
        %v566 = vpop.permute.xlu0 %565
        %s568 = sor.u32 256, 16
        %569 = vbcast.lane.b32.xlu0 %v559, %s568
        %v570 = vpop.permute.xlu0 %569
        %s572 = sor.u32 256, 24
        %573 = vbcast.lane.b32.xlu0 %v559, %s572
        %v574 = vpop.permute.xlu0 %573
        %s576 = sor.u32 256, 32
        %577 = vbcast.lane.b32.xlu0 %v559, %s576
        %v578 = vpop.permute.xlu0 %577
        %s580 = sor.u32 256, 40
        %581 = vbcast.lane.b32.xlu0 %v559, %s580
        %v582 = vpop.permute.xlu0 %581
        %s584 = sor.u32 256, 48
        %585 = vbcast.lane.b32.xlu0 %v559, %s584
        %v586 = vpop.permute.xlu0 %585
        %s588 = sor.u32 256, 56
        %589 = vbcast.lane.b32.xlu0 %v559, %s588
        %v590 = vpop.permute.xlu0 %589
        %s592 = sor.u32 256, 64
        %593 = vbcast.lane.b32.xlu0 %v559, %s592
        %v594 = vpop.permute.xlu0 %593
        %s596 = sor.u32 256, 72
        %597 = vbcast.lane.b32.xlu0 %v559, %s596
        %v598 = vpop.permute.xlu0 %597
        %s600 = sor.u32 256, 80
        %601 = vbcast.lane.b32.xlu0 %v559, %s600
        %v602 = vpop.permute.xlu0 %601
        %s604 = sor.u32 256, 88
        %605 = vbcast.lane.b32.xlu0 %v559, %s604
        %v606 = vpop.permute.xlu0 %605
        %s608 = sor.u32 256, 96
        %609 = vbcast.lane.b32.xlu0 %v559, %s608
        %v610 = vpop.permute.xlu0 %609
        %s612 = sor.u32 256, 104
        %613 = vbcast.lane.b32.xlu0 %v559, %s612
        %v614 = vpop.permute.xlu0 %613
        %s616 = sor.u32 256, 112
        %617 = vbcast.lane.b32.xlu0 %v559, %s616
        %v618 = vpop.permute.xlu0 %617
        %s620 = sor.u32 256, 120
        %621 = vbcast.lane.b32.xlu0 %v559, %s620
        %v622 = vpop.permute.xlu0 %621
        %v623 = vlaneseq
        %v624 = vshrl.u32 %v623, 7
        %v625 = vsub.s32 5, %v624
        %v626 = vrot.slane %v287, %v625
        %628 = vbcast.lane.b32.xlu0 %v626, 256
        %v629 = vpop.permute.xlu0 %628
        %s631 = sor.u32 256, 8
        %632 = vbcast.lane.b32.xlu0 %v626, %s631
        %v633 = vpop.permute.xlu0 %632
        %s635 = sor.u32 256, 16
        %636 = vbcast.lane.b32.xlu0 %v626, %s635
        %v637 = vpop.permute.xlu0 %636
        %s639 = sor.u32 256, 24
        %640 = vbcast.lane.b32.xlu0 %v626, %s639
        %v641 = vpop.permute.xlu0 %640
        %s643 = sor.u32 256, 32
        %644 = vbcast.lane.b32.xlu0 %v626, %s643
        %v645 = vpop.permute.xlu0 %644
        %s647 = sor.u32 256, 40
        %648 = vbcast.lane.b32.xlu0 %v626, %s647
        %v649 = vpop.permute.xlu0 %648
        %s651 = sor.u32 256, 48
        %652 = vbcast.lane.b32.xlu0 %v626, %s651
        %v653 = vpop.permute.xlu0 %652
        %s655 = sor.u32 256, 56
        %656 = vbcast.lane.b32.xlu0 %v626, %s655
        %v657 = vpop.permute.xlu0 %656
        %s659 = sor.u32 256, 64
        %660 = vbcast.lane.b32.xlu0 %v626, %s659
        %v661 = vpop.permute.xlu0 %660
        %s663 = sor.u32 256, 72
        %664 = vbcast.lane.b32.xlu0 %v626, %s663
        %v665 = vpop.permute.xlu0 %664
        %s667 = sor.u32 256, 80
        %668 = vbcast.lane.b32.xlu0 %v626, %s667
        %v669 = vpop.permute.xlu0 %668
        %s671 = sor.u32 256, 88
        %672 = vbcast.lane.b32.xlu0 %v626, %s671
        %v673 = vpop.permute.xlu0 %672
        %s675 = sor.u32 256, 96
        %676 = vbcast.lane.b32.xlu0 %v626, %s675
        %v677 = vpop.permute.xlu0 %676
        %s679 = sor.u32 256, 104
        %680 = vbcast.lane.b32.xlu0 %v626, %s679
        %v681 = vpop.permute.xlu0 %680
        %s683 = sor.u32 256, 112
        %684 = vbcast.lane.b32.xlu0 %v626, %s683
        %v685 = vpop.permute.xlu0 %684
        %s687 = sor.u32 256, 120
        %688 = vbcast.lane.b32.xlu0 %v626, %s687
        %v689 = vpop.permute.xlu0 %688
        %v690 = vlaneseq
        %v691 = vshrl.u32 %v690, 7
        %v692 = vsub.s32 6, %v691
        %v693 = vrot.slane %v287, %v692
        %695 = vbcast.lane.b32.xlu0 %v693, 256
        %v696 = vpop.permute.xlu0 %695
        %s698 = sor.u32 256, 8
        %699 = vbcast.lane.b32.xlu0 %v693, %s698
        %v700 = vpop.permute.xlu0 %699
        %s702 = sor.u32 256, 16
        %703 = vbcast.lane.b32.xlu0 %v693, %s702
        %v704 = vpop.permute.xlu0 %703
        %s706 = sor.u32 256, 24
        %707 = vbcast.lane.b32.xlu0 %v693, %s706
        %v708 = vpop.permute.xlu0 %707
        %s710 = sor.u32 256, 32
        %711 = vbcast.lane.b32.xlu0 %v693, %s710
        %v712 = vpop.permute.xlu0 %711
        %s714 = sor.u32 256, 40
        %715 = vbcast.lane.b32.xlu0 %v693, %s714
        %v716 = vpop.permute.xlu0 %715
        %s718 = sor.u32 256, 48
        %719 = vbcast.lane.b32.xlu0 %v693, %s718
        %v720 = vpop.permute.xlu0 %719
        %s722 = sor.u32 256, 56
        %723 = vbcast.lane.b32.xlu0 %v693, %s722
        %v724 = vpop.permute.xlu0 %723
        %s726 = sor.u32 256, 64
        %727 = vbcast.lane.b32.xlu0 %v693, %s726
        %v728 = vpop.permute.xlu0 %727
        %s730 = sor.u32 256, 72
        %731 = vbcast.lane.b32.xlu0 %v693, %s730
        %v732 = vpop.permute.xlu0 %731
        %s734 = sor.u32 256, 80
        %735 = vbcast.lane.b32.xlu0 %v693, %s734
        %v736 = vpop.permute.xlu0 %735
        %s738 = sor.u32 256, 88
        %739 = vbcast.lane.b32.xlu0 %v693, %s738
        %v740 = vpop.permute.xlu0 %739
        %s742 = sor.u32 256, 96
        %743 = vbcast.lane.b32.xlu0 %v693, %s742
        %v744 = vpop.permute.xlu0 %743
        %s746 = sor.u32 256, 104
        %747 = vbcast.lane.b32.xlu0 %v693, %s746
        %v748 = vpop.permute.xlu0 %747
        %s750 = sor.u32 256, 112
        %751 = vbcast.lane.b32.xlu0 %v693, %s750
        %v752 = vpop.permute.xlu0 %751
        %s754 = sor.u32 256, 120
        %755 = vbcast.lane.b32.xlu0 %v693, %s754
        %v756 = vpop.permute.xlu0 %755
        %v757 = vlaneseq
        %v758 = vshrl.u32 %v757, 7
        %v759 = vsub.s32 7, %v758
        %v760 = vrot.slane %v287, %v759
        %762 = vbcast.lane.b32.xlu0 %v760, 256
        %v763 = vpop.permute.xlu0 %762
        %s765 = sor.u32 256, 8
        %766 = vbcast.lane.b32.xlu0 %v760, %s765
        %v767 = vpop.permute.xlu0 %766
        %s769 = sor.u32 256, 16
        %770 = vbcast.lane.b32.xlu0 %v760, %s769
        %v771 = vpop.permute.xlu0 %770
        %s773 = sor.u32 256, 24
        %774 = vbcast.lane.b32.xlu0 %v760, %s773
        %v775 = vpop.permute.xlu0 %774
        %s777 = sor.u32 256, 32
        %778 = vbcast.lane.b32.xlu0 %v760, %s777
        %v779 = vpop.permute.xlu0 %778
        %s781 = sor.u32 256, 40
        %782 = vbcast.lane.b32.xlu0 %v760, %s781
        %v783 = vpop.permute.xlu0 %782
        %s785 = sor.u32 256, 48
        %786 = vbcast.lane.b32.xlu0 %v760, %s785
        %v787 = vpop.permute.xlu0 %786
        %s789 = sor.u32 256, 56
        %790 = vbcast.lane.b32.xlu0 %v760, %s789
        %v791 = vpop.permute.xlu0 %790
        %s793 = sor.u32 256, 64
        %794 = vbcast.lane.b32.xlu0 %v760, %s793
        %v795 = vpop.permute.xlu0 %794
        %s797 = sor.u32 256, 72
        %798 = vbcast.lane.b32.xlu0 %v760, %s797
        %v799 = vpop.permute.xlu0 %798
        %s801 = sor.u32 256, 80
        %802 = vbcast.lane.b32.xlu0 %v760, %s801
        %v803 = vpop.permute.xlu0 %802
        %s805 = sor.u32 256, 88
        %806 = vbcast.lane.b32.xlu0 %v760, %s805
        %v807 = vpop.permute.xlu0 %806
        %s809 = sor.u32 256, 96
        %810 = vbcast.lane.b32.xlu0 %v760, %s809
        %v811 = vpop.permute.xlu0 %810
        %s813 = sor.u32 256, 104
        %814 = vbcast.lane.b32.xlu0 %v760, %s813
        %v815 = vpop.permute.xlu0 %814
        %s817 = sor.u32 256, 112
        %818 = vbcast.lane.b32.xlu0 %v760, %s817
        %v819 = vpop.permute.xlu0 %818
        %s821 = sor.u32 256, 120
        %822 = vbcast.lane.b32.xlu0 %v760, %s821
        %v823 = vpop.permute.xlu0 %822
        %v824 = vsub.f32 %v271, %v294
        %v825 = vsub.f32 %v272, %v298
        %v826 = vsub.f32 %v273, %v302
        %v827 = vsub.f32 %v274, %v306
        %v828 = vsub.f32 %v275, %v310
        %v829 = vsub.f32 %v276, %v314
        %v830 = vsub.f32 %v277, %v318
        %v831 = vsub.f32 %v278, %v322
        %v832 = vsub.f32 %v279, %v326
        %v833 = vsub.f32 %v280, %v330
        %v834 = vsub.f32 %v281, %v334
        %v835 = vsub.f32 %v282, %v338
        %v836 = vsub.f32 %v283, %v342
        %v837 = vsub.f32 %v284, %v346
        %v838 = vsub.f32 %v285, %v350
        %v839 = vsub.f32 %v286, %v354
        %v840 = vsub.f32 %v271, %v361
        %v841 = vsub.f32 %v272, %v365
        %v842 = vsub.f32 %v273, %v369
        %v843 = vsub.f32 %v274, %v373
        %v844 = vsub.f32 %v275, %v377
        %v845 = vsub.f32 %v276, %v381
        %v846 = vsub.f32 %v277, %v385
        %v847 = vsub.f32 %v278, %v389
        %v848 = vsub.f32 %v279, %v393
        %v849 = vsub.f32 %v280, %v397
        %v850 = vsub.f32 %v281, %v401
        %v851 = vsub.f32 %v282, %v405
        %v852 = vsub.f32 %v283, %v409
        %v853 = vsub.f32 %v284, %v413
        %v854 = vsub.f32 %v285, %v417
        %v855 = vsub.f32 %v286, %v421
        %v856 = vsub.f32 %v271, %v428
        %v857 = vsub.f32 %v272, %v432
        %v858 = vsub.f32 %v273, %v436
        %v859 = vsub.f32 %v274, %v440
        %v860 = vsub.f32 %v275, %v444
        %v861 = vsub.f32 %v276, %v448
        %v862 = vsub.f32 %v277, %v452
        %v863 = vsub.f32 %v278, %v456
        %v864 = vsub.f32 %v279, %v460
        %v865 = vsub.f32 %v280, %v464
        %v866 = vsub.f32 %v281, %v468
        %v867 = vsub.f32 %v282, %v472
        %v868 = vsub.f32 %v283, %v476
        %v869 = vsub.f32 %v284, %v480
        %v870 = vsub.f32 %v285, %v484
        %v871 = vsub.f32 %v286, %v488
        %v872 = vsub.f32 %v271, %v495
        %v873 = vsub.f32 %v272, %v499
        %v874 = vsub.f32 %v273, %v503
        %v875 = vsub.f32 %v274, %v507
        %v876 = vsub.f32 %v275, %v511
        %v877 = vsub.f32 %v276, %v515
        %v878 = vsub.f32 %v277, %v519
        %v879 = vsub.f32 %v278, %v523
        %v880 = vsub.f32 %v279, %v527
        %v881 = vsub.f32 %v280, %v531
        %v882 = vsub.f32 %v281, %v535
        %v883 = vsub.f32 %v282, %v539
        %v884 = vsub.f32 %v283, %v543
        %v885 = vsub.f32 %v284, %v547
        %v886 = vsub.f32 %v285, %v551
        %v887 = vsub.f32 %v286, %v555
        %v888 = vsub.f32 %v271, %v562
        %v889 = vsub.f32 %v272, %v566
        %v890 = vsub.f32 %v273, %v570
        %v891 = vsub.f32 %v274, %v574
        %v892 = vsub.f32 %v275, %v578
        %v893 = vsub.f32 %v276, %v582
        %v894 = vsub.f32 %v277, %v586
        %v895 = vsub.f32 %v278, %v590
        %v896 = vsub.f32 %v279, %v594
        %v897 = vsub.f32 %v280, %v598
        %v898 = vsub.f32 %v281, %v602
        %v899 = vsub.f32 %v282, %v606
        %v900 = vsub.f32 %v283, %v610
        %v901 = vsub.f32 %v284, %v614
        %v902 = vsub.f32 %v285, %v618
        %v903 = vsub.f32 %v286, %v622
        %v904 = vsub.f32 %v271, %v629
        %v905 = vsub.f32 %v272, %v633
        %v906 = vsub.f32 %v273, %v637
        %v907 = vsub.f32 %v274, %v641
        %v908 = vsub.f32 %v275, %v645
        %v909 = vsub.f32 %v276, %v649
        %v910 = vsub.f32 %v277, %v653
        %v911 = vsub.f32 %v278, %v657
        %v912 = vsub.f32 %v279, %v661
        %v913 = vsub.f32 %v280, %v665
        %v914 = vsub.f32 %v281, %v669
        %v915 = vsub.f32 %v282, %v673
        %v916 = vsub.f32 %v283, %v677
        %v917 = vsub.f32 %v284, %v681
        %v918 = vsub.f32 %v285, %v685
        %v919 = vsub.f32 %v286, %v689
        %v920 = vsub.f32 %v271, %v696
        %v921 = vsub.f32 %v272, %v700
        %v922 = vsub.f32 %v273, %v704
        %v923 = vsub.f32 %v274, %v708
        %v924 = vsub.f32 %v275, %v712
        %v925 = vsub.f32 %v276, %v716
        %v926 = vsub.f32 %v277, %v720
        %v927 = vsub.f32 %v278, %v724
        %v928 = vsub.f32 %v279, %v728
        %v929 = vsub.f32 %v280, %v732
        %v930 = vsub.f32 %v281, %v736
        %v931 = vsub.f32 %v282, %v740
        %v932 = vsub.f32 %v283, %v744
        %v933 = vsub.f32 %v284, %v748
        %v934 = vsub.f32 %v285, %v752
        %v935 = vsub.f32 %v286, %v756
        %v936 = vsub.f32 %v271, %v763
        %v937 = vsub.f32 %v272, %v767
        %v938 = vsub.f32 %v273, %v771
        %v939 = vsub.f32 %v274, %v775
        %v940 = vsub.f32 %v275, %v779
        %v941 = vsub.f32 %v276, %v783
        %v942 = vsub.f32 %v277, %v787
        %v943 = vsub.f32 %v278, %v791
        %v944 = vsub.f32 %v279, %v795
        %v945 = vsub.f32 %v280, %v799
        %v946 = vsub.f32 %v281, %v803
        %v947 = vsub.f32 %v282, %v807
        %v948 = vsub.f32 %v283, %v811
        %v949 = vsub.f32 %v284, %v815
        %v950 = vsub.f32 %v285, %v819
        %v951 = vsub.f32 %v286, %v823
        %v952 = vand.u32 2147483647, %v824
        %v953 = vand.u32 2147483647, %v825
        %v954 = vand.u32 2147483647, %v826
        %v955 = vand.u32 2147483647, %v827
        %v956 = vand.u32 2147483647, %v828
        %v957 = vand.u32 2147483647, %v829
        %v958 = vand.u32 2147483647, %v830
        %v959 = vand.u32 2147483647, %v831
        %v960 = vand.u32 2147483647, %v832
        %v961 = vand.u32 2147483647, %v833
        %v962 = vand.u32 2147483647, %v834
        %v963 = vand.u32 2147483647, %v835
        %v964 = vand.u32 2147483647, %v836
        %v965 = vand.u32 2147483647, %v837
        %v966 = vand.u32 2147483647, %v838
        %v967 = vand.u32 2147483647, %v839
        %v968 = vand.u32 2147483647, %v840
        %v969 = vand.u32 2147483647, %v841
        %v970 = vand.u32 2147483647, %v842
        %v971 = vand.u32 2147483647, %v843
        %v972 = vand.u32 2147483647, %v844
        %v973 = vand.u32 2147483647, %v845
        %v974 = vand.u32 2147483647, %v846
        %v975 = vand.u32 2147483647, %v847
        %v976 = vand.u32 2147483647, %v848
        %v977 = vand.u32 2147483647, %v849
        %v978 = vand.u32 2147483647, %v850
        %v979 = vand.u32 2147483647, %v851
        %v980 = vand.u32 2147483647, %v852
        %v981 = vand.u32 2147483647, %v853
        %v982 = vand.u32 2147483647, %v854
        %v983 = vand.u32 2147483647, %v855
        %v984 = vand.u32 2147483647, %v856
        %v985 = vand.u32 2147483647, %v857
        %v986 = vand.u32 2147483647, %v858
        %v987 = vand.u32 2147483647, %v859
        %v988 = vand.u32 2147483647, %v860
        %v989 = vand.u32 2147483647, %v861
        %v990 = vand.u32 2147483647, %v862
        %v991 = vand.u32 2147483647, %v863
        %v992 = vand.u32 2147483647, %v864
        %v993 = vand.u32 2147483647, %v865
        %v994 = vand.u32 2147483647, %v866
        %v995 = vand.u32 2147483647, %v867
        %v996 = vand.u32 2147483647, %v868
        %v997 = vand.u32 2147483647, %v869
        %v998 = vand.u32 2147483647, %v870
        %v999 = vand.u32 2147483647, %v871
        %v1000 = vand.u32 2147483647, %v872
        %v1001 = vand.u32 2147483647, %v873
        %v1002 = vand.u32 2147483647, %v874
        %v1003 = vand.u32 2147483647, %v875
        %v1004 = vand.u32 2147483647, %v876
        %v1005 = vand.u32 2147483647, %v877
        %v1006 = vand.u32 2147483647, %v878
        %v1007 = vand.u32 2147483647, %v879
        %v1008 = vand.u32 2147483647, %v880
        %v1009 = vand.u32 2147483647, %v881
        %v1010 = vand.u32 2147483647, %v882
        %v1011 = vand.u32 2147483647, %v883
        %v1012 = vand.u32 2147483647, %v884
        %v1013 = vand.u32 2147483647, %v885
        %v1014 = vand.u32 2147483647, %v886
        %v1015 = vand.u32 2147483647, %v887
        %v1016 = vand.u32 2147483647, %v888
        %v1017 = vand.u32 2147483647, %v889
        %v1018 = vand.u32 2147483647, %v890
        %v1019 = vand.u32 2147483647, %v891
        %v1020 = vand.u32 2147483647, %v892
        %v1021 = vand.u32 2147483647, %v893
        %v1022 = vand.u32 2147483647, %v894
        %v1023 = vand.u32 2147483647, %v895
        %v1024 = vand.u32 2147483647, %v896
        %v1025 = vand.u32 2147483647, %v897
        %v1026 = vand.u32 2147483647, %v898
        %v1027 = vand.u32 2147483647, %v899
        %v1028 = vand.u32 2147483647, %v900
        %v1029 = vand.u32 2147483647, %v901
        %v1030 = vand.u32 2147483647, %v902
        %v1031 = vand.u32 2147483647, %v903
        %v1032 = vand.u32 2147483647, %v904
        %v1033 = vand.u32 2147483647, %v905
        %v1034 = vand.u32 2147483647, %v906
        %v1035 = vand.u32 2147483647, %v907
        %v1036 = vand.u32 2147483647, %v908
        %v1037 = vand.u32 2147483647, %v909
        %v1038 = vand.u32 2147483647, %v910
        %v1039 = vand.u32 2147483647, %v911
        %v1040 = vand.u32 2147483647, %v912
        %v1041 = vand.u32 2147483647, %v913
        %v1042 = vand.u32 2147483647, %v914
        %v1043 = vand.u32 2147483647, %v915
        %v1044 = vand.u32 2147483647, %v916
        %v1045 = vand.u32 2147483647, %v917
        %v1046 = vand.u32 2147483647, %v918
        %v1047 = vand.u32 2147483647, %v919
        %v1048 = vand.u32 2147483647, %v920
        %v1049 = vand.u32 2147483647, %v921
        %v1050 = vand.u32 2147483647, %v922
        %v1051 = vand.u32 2147483647, %v923
        %v1052 = vand.u32 2147483647, %v924
        %v1053 = vand.u32 2147483647, %v925
        %v1054 = vand.u32 2147483647, %v926
        %v1055 = vand.u32 2147483647, %v927
        %v1056 = vand.u32 2147483647, %v928
        %v1057 = vand.u32 2147483647, %v929
        %v1058 = vand.u32 2147483647, %v930
        %v1059 = vand.u32 2147483647, %v931
        %v1060 = vand.u32 2147483647, %v932
        %v1061 = vand.u32 2147483647, %v933
        %v1062 = vand.u32 2147483647, %v934
        %v1063 = vand.u32 2147483647, %v935
        %v1064 = vand.u32 2147483647, %v936
        %v1065 = vand.u32 2147483647, %v937
        %v1066 = vand.u32 2147483647, %v938
        %v1067 = vand.u32 2147483647, %v939
        %v1068 = vand.u32 2147483647, %v940
        %v1069 = vand.u32 2147483647, %v941
        %v1070 = vand.u32 2147483647, %v942
        %v1071 = vand.u32 2147483647, %v943
        %v1072 = vand.u32 2147483647, %v944
        %v1073 = vand.u32 2147483647, %v945
        %v1074 = vand.u32 2147483647, %v946
        %v1075 = vand.u32 2147483647, %v947
        %v1076 = vand.u32 2147483647, %v948
        %v1077 = vand.u32 2147483647, %v949
        %v1078 = vand.u32 2147483647, %v950
        %v1079 = vand.u32 2147483647, %v951
        %v1080 = vld [vmem:[#allocation2] sm:$0xff]
        %v1081 = vadd.f32 %v952, %v953
        %v1082 = vadd.f32 %v1081, %v954
        %v1083 = vadd.f32 %v1082, %v955
        %v1084 = vadd.f32 %v1083, %v956
        %v1085 = vadd.f32 %v1084, %v957
        %v1086 = vadd.f32 %v1085, %v958
        %v1087 = vadd.f32 %v1086, %v959
        %v1088 = vadd.f32 %v1087, %v960
        %v1089 = vadd.f32 %v1088, %v961
        %v1090 = vadd.f32 %v1089, %v962
        %v1091 = vadd.f32 %v1090, %v963
        %v1092 = vadd.f32 %v1091, %v964
        %v1093 = vadd.f32 %v1092, %v965
        %v1094 = vadd.f32 %v1093, %v966
        %v1095 = vadd.f32 %v1094, %v967
        %v1096 = vrot.slane %v1095, 4
        %v1097 = vadd.f32 %v1095, %v1096
        %v1098 = vrot.slane %v1097, 2
        %v1099 = vadd.f32 %v1097, %v1098
        %v1100 = vrot.slane %v1099, 1
        %v1101 = vadd.f32 %v1099, %v1100
        %v1102 = vadd.f32 %v968, %v969
        %v1103 = vadd.f32 %v1102, %v970
        %v1104 = vadd.f32 %v1103, %v971
        %v1105 = vadd.f32 %v1104, %v972
        %v1106 = vadd.f32 %v1105, %v973
        %v1107 = vadd.f32 %v1106, %v974
        %v1108 = vadd.f32 %v1107, %v975
        %v1109 = vadd.f32 %v1108, %v976
        %v1110 = vadd.f32 %v1109, %v977
        %v1111 = vadd.f32 %v1110, %v978
        %v1112 = vadd.f32 %v1111, %v979
        %v1113 = vadd.f32 %v1112, %v980
        %v1114 = vadd.f32 %v1113, %v981
        %v1115 = vadd.f32 %v1114, %v982
        %v1116 = vadd.f32 %v1115, %v983
        %v1117 = vrot.slane %v1116, 4
        %v1118 = vadd.f32 %v1116, %v1117
        %v1119 = vrot.slane %v1118, 2
        %v1120 = vadd.f32 %v1118, %v1119
        %v1121 = vrot.slane %v1120, 1
        %v1122 = vadd.f32 %v1120, %v1121
        %v1123 = vadd.f32 %v984, %v985
        %v1124 = vadd.f32 %v1123, %v986
        %v1125 = vadd.f32 %v1124, %v987
        %v1126 = vadd.f32 %v1125, %v988
        %v1127 = vadd.f32 %v1126, %v989
        %v1128 = vadd.f32 %v1127, %v990
        %v1129 = vadd.f32 %v1128, %v991
        %v1130 = vadd.f32 %v1129, %v992
        %v1131 = vadd.f32 %v1130, %v993
        %v1132 = vadd.f32 %v1131, %v994
        %v1133 = vadd.f32 %v1132, %v995
        %v1134 = vadd.f32 %v1133, %v996
        %v1135 = vadd.f32 %v1134, %v997
        %v1136 = vadd.f32 %v1135, %v998
        %v1137 = vadd.f32 %v1136, %v999
        %v1138 = vrot.slane %v1137, 4
        %v1139 = vadd.f32 %v1137, %v1138
        %v1140 = vrot.slane %v1139, 2
        %v1141 = vadd.f32 %v1139, %v1140
        %v1142 = vrot.slane %v1141, 1
        %v1143 = vadd.f32 %v1141, %v1142
        %v1144 = vadd.f32 %v1000, %v1001
        %v1145 = vadd.f32 %v1144, %v1002
        %v1146 = vadd.f32 %v1145, %v1003
        %v1147 = vadd.f32 %v1146, %v1004
        %v1148 = vadd.f32 %v1147, %v1005
        %v1149 = vadd.f32 %v1148, %v1006
        %v1150 = vadd.f32 %v1149, %v1007
        %v1151 = vadd.f32 %v1150, %v1008
        %v1152 = vadd.f32 %v1151, %v1009
        %v1153 = vadd.f32 %v1152, %v1010
        %v1154 = vadd.f32 %v1153, %v1011
        %v1155 = vadd.f32 %v1154, %v1012
        %v1156 = vadd.f32 %v1155, %v1013
        %v1157 = vadd.f32 %v1156, %v1014
        %v1158 = vadd.f32 %v1157, %v1015
        %v1159 = vrot.slane %v1158, 4
        %v1160 = vadd.f32 %v1158, %v1159
        %v1161 = vrot.slane %v1160, 2
        %v1162 = vadd.f32 %v1160, %v1161
        %v1163 = vrot.slane %v1162, 1
        %v1164 = vadd.f32 %v1162, %v1163
        %v1165 = vadd.f32 %v1016, %v1017
        %v1166 = vadd.f32 %v1165, %v1018
        %v1167 = vadd.f32 %v1166, %v1019
        %v1168 = vadd.f32 %v1167, %v1020
        %v1169 = vadd.f32 %v1168, %v1021
        %v1170 = vadd.f32 %v1169, %v1022
        %v1171 = vadd.f32 %v1170, %v1023
        %v1172 = vadd.f32 %v1171, %v1024
        %v1173 = vadd.f32 %v1172, %v1025
        %v1174 = vadd.f32 %v1173, %v1026
        %v1175 = vadd.f32 %v1174, %v1027
        %v1176 = vadd.f32 %v1175, %v1028
        %v1177 = vadd.f32 %v1176, %v1029
        %v1178 = vadd.f32 %v1177, %v1030
        %v1179 = vadd.f32 %v1178, %v1031
        %v1180 = vrot.slane %v1179, 4
        %v1181 = vadd.f32 %v1179, %v1180
        %v1182 = vrot.slane %v1181, 2
        %v1183 = vadd.f32 %v1181, %v1182
        %v1184 = vrot.slane %v1183, 1
        %v1185 = vadd.f32 %v1183, %v1184
        %v1186 = vadd.f32 %v1032, %v1033
        %v1187 = vadd.f32 %v1186, %v1034
        %v1188 = vadd.f32 %v1187, %v1035
        %v1189 = vadd.f32 %v1188, %v1036
        %v1190 = vadd.f32 %v1189, %v1037
        %v1191 = vadd.f32 %v1190, %v1038
        %v1192 = vadd.f32 %v1191, %v1039
        %v1193 = vadd.f32 %v1192, %v1040
        %v1194 = vadd.f32 %v1193, %v1041
        %v1195 = vadd.f32 %v1194, %v1042
        %v1196 = vadd.f32 %v1195, %v1043
        %v1197 = vadd.f32 %v1196, %v1044
        %v1198 = vadd.f32 %v1197, %v1045
        %v1199 = vadd.f32 %v1198, %v1046
        %v1200 = vadd.f32 %v1199, %v1047
        %v1201 = vrot.slane %v1200, 4
        %v1202 = vadd.f32 %v1200, %v1201
        %v1203 = vrot.slane %v1202, 2
        %v1204 = vadd.f32 %v1202, %v1203
        %v1205 = vrot.slane %v1204, 1
        %v1206 = vadd.f32 %v1204, %v1205
        %v1207 = vadd.f32 %v1048, %v1049
        %v1208 = vadd.f32 %v1207, %v1050
        %v1209 = vadd.f32 %v1208, %v1051
        %v1210 = vadd.f32 %v1209, %v1052
        %v1211 = vadd.f32 %v1210, %v1053
        %v1212 = vadd.f32 %v1211, %v1054
        %v1213 = vadd.f32 %v1212, %v1055
        %v1214 = vadd.f32 %v1213, %v1056
        %v1215 = vadd.f32 %v1214, %v1057
        %v1216 = vadd.f32 %v1215, %v1058
        %v1217 = vadd.f32 %v1216, %v1059
        %v1218 = vadd.f32 %v1217, %v1060
        %v1219 = vadd.f32 %v1218, %v1061
        %v1220 = vadd.f32 %v1219, %v1062
        %v1221 = vadd.f32 %v1220, %v1063
        %v1222 = vrot.slane %v1221, 4
        %v1223 = vadd.f32 %v1221, %v1222
        %v1224 = vrot.slane %v1223, 2
        %v1225 = vadd.f32 %v1223, %v1224
        %v1226 = vrot.slane %v1225, 1
        %v1227 = vadd.f32 %v1225, %v1226
        %v1228 = vadd.f32 %v1064, %v1065
        %v1229 = vadd.f32 %v1228, %v1066
        %v1230 = vadd.f32 %v1229, %v1067
        %v1231 = vadd.f32 %v1230, %v1068
        %v1232 = vadd.f32 %v1231, %v1069
        %v1233 = vadd.f32 %v1232, %v1070
        %v1234 = vadd.f32 %v1233, %v1071
        %v1235 = vadd.f32 %v1234, %v1072
        %v1236 = vadd.f32 %v1235, %v1073
        %v1237 = vadd.f32 %v1236, %v1074
        %v1238 = vadd.f32 %v1237, %v1075
        %v1239 = vadd.f32 %v1238, %v1076
        %v1240 = vadd.f32 %v1239, %v1077
        %v1241 = vadd.f32 %v1240, %v1078
        %v1242 = vadd.f32 %v1241, %v1079
        %v1243 = vrot.slane %v1242, 4
        %v1244 = vadd.f32 %v1242, %v1243
        %v1245 = vrot.slane %v1244, 2
        %v1246 = vadd.f32 %v1244, %v1245
        %v1247 = vrot.slane %v1246, 1
        %v1248 = vadd.f32 %v1246, %v1247
        %vm1257 = vcmask 1041409
        %v1258 = vsel %vm1257, %v1122, %v1101
        %vm1259 = vcmask 1042434
        %v1260 = vsel %vm1259, %v1143, %v1258
        %vm1261 = vcmask 1043459
        %v1262 = vsel %vm1261, %v1164, %v1260
        %vm1263 = vcmask 1044484
        %v1264 = vsel %vm1263, %v1185, %v1262
        %vm1265 = vcmask 1045509
        %v1266 = vsel %vm1265, %v1206, %v1264
        %vm1267 = vcmask 1046534
        %v1268 = vsel %vm1267, %v1227, %v1266
        %vm1269 = vcmask 1047559
        %v1270 = vsel %vm1269, %v1248, %v1268
        %v1272 = vadd.f32 %v1080, %v1270
        %1273 = vst [vmem:[#allocation2] sm:$0xff] %v1272
        %s1274 = scalar_lea.vmem %s220, 8 [#allocation6]
        %v1275 = vld [vmem:[%s1274] sm:$0xff]
        %v1276 = vlaneseq
        %v1277 = vshrl.u32 %v1276, 7
        %v1278 = vsub.s32 0, %v1277
        %v1279 = vrot.slane %v1275, %v1278
        %1281 = vbcast.lane.b32.xlu0 %v1279, 256
        %v1282 = vpop.permute.xlu0 %1281
        %s1284 = sor.u32 256, 8
        %1285 = vbcast.lane.b32.xlu0 %v1279, %s1284
        %v1286 = vpop.permute.xlu0 %1285
        %s1288 = sor.u32 256, 16
        %1289 = vbcast.lane.b32.xlu0 %v1279, %s1288
        %v1290 = vpop.permute.xlu0 %1289
        %s1292 = sor.u32 256, 24
        %1293 = vbcast.lane.b32.xlu0 %v1279, %s1292
        %v1294 = vpop.permute.xlu0 %1293
        %s1296 = sor.u32 256, 32
        %1297 = vbcast.lane.b32.xlu0 %v1279, %s1296
        %v1298 = vpop.permute.xlu0 %1297
        %s1300 = sor.u32 256, 40
        %1301 = vbcast.lane.b32.xlu0 %v1279, %s1300
        %v1302 = vpop.permute.xlu0 %1301
        %s1304 = sor.u32 256, 48
        %1305 = vbcast.lane.b32.xlu0 %v1279, %s1304
        %v1306 = vpop.permute.xlu0 %1305
        %s1308 = sor.u32 256, 56
        %1309 = vbcast.lane.b32.xlu0 %v1279, %s1308
        %v1310 = vpop.permute.xlu0 %1309
        %s1312 = sor.u32 256, 64
        %1313 = vbcast.lane.b32.xlu0 %v1279, %s1312
        %v1314 = vpop.permute.xlu0 %1313
        %s1316 = sor.u32 256, 72
        %1317 = vbcast.lane.b32.xlu0 %v1279, %s1316
        %v1318 = vpop.permute.xlu0 %1317
        %s1320 = sor.u32 256, 80
        %1321 = vbcast.lane.b32.xlu0 %v1279, %s1320
        %v1322 = vpop.permute.xlu0 %1321
        %s1324 = sor.u32 256, 88
        %1325 = vbcast.lane.b32.xlu0 %v1279, %s1324
        %v1326 = vpop.permute.xlu0 %1325
        %s1328 = sor.u32 256, 96
        %1329 = vbcast.lane.b32.xlu0 %v1279, %s1328
        %v1330 = vpop.permute.xlu0 %1329
        %s1332 = sor.u32 256, 104
        %1333 = vbcast.lane.b32.xlu0 %v1279, %s1332
        %v1334 = vpop.permute.xlu0 %1333
        %s1336 = sor.u32 256, 112
        %1337 = vbcast.lane.b32.xlu0 %v1279, %s1336
        %v1338 = vpop.permute.xlu0 %1337
        %s1340 = sor.u32 256, 120
        %1341 = vbcast.lane.b32.xlu0 %v1279, %s1340
        %v1342 = vpop.permute.xlu0 %1341
        %v1343 = vlaneseq
        %v1344 = vshrl.u32 %v1343, 7
        %v1345 = vsub.s32 1, %v1344
        %v1346 = vrot.slane %v1275, %v1345
        %1348 = vbcast.lane.b32.xlu0 %v1346, 256
        %v1349 = vpop.permute.xlu0 %1348
        %s1351 = sor.u32 256, 8
        %1352 = vbcast.lane.b32.xlu0 %v1346, %s1351
        %v1353 = vpop.permute.xlu0 %1352
        %s1355 = sor.u32 256, 16
        %1356 = vbcast.lane.b32.xlu0 %v1346, %s1355
        %v1357 = vpop.permute.xlu0 %1356
        %s1359 = sor.u32 256, 24
        %1360 = vbcast.lane.b32.xlu0 %v1346, %s1359
        %v1361 = vpop.permute.xlu0 %1360
        %s1363 = sor.u32 256, 32
        %1364 = vbcast.lane.b32.xlu0 %v1346, %s1363
        %v1365 = vpop.permute.xlu0 %1364
        %s1367 = sor.u32 256, 40
        %1368 = vbcast.lane.b32.xlu0 %v1346, %s1367
        %v1369 = vpop.permute.xlu0 %1368
        %s1371 = sor.u32 256, 48
        %1372 = vbcast.lane.b32.xlu0 %v1346, %s1371
        %v1373 = vpop.permute.xlu0 %1372
        %s1375 = sor.u32 256, 56
        %1376 = vbcast.lane.b32.xlu0 %v1346, %s1375
        %v1377 = vpop.permute.xlu0 %1376
        %s1379 = sor.u32 256, 64
        %1380 = vbcast.lane.b32.xlu0 %v1346, %s1379
        %v1381 = vpop.permute.xlu0 %1380
        %s1383 = sor.u32 256, 72
        %1384 = vbcast.lane.b32.xlu0 %v1346, %s1383
        %v1385 = vpop.permute.xlu0 %1384
        %s1387 = sor.u32 256, 80
        %1388 = vbcast.lane.b32.xlu0 %v1346, %s1387
        %v1389 = vpop.permute.xlu0 %1388
        %s1391 = sor.u32 256, 88
        %1392 = vbcast.lane.b32.xlu0 %v1346, %s1391
        %v1393 = vpop.permute.xlu0 %1392
        %s1395 = sor.u32 256, 96
        %1396 = vbcast.lane.b32.xlu0 %v1346, %s1395
        %v1397 = vpop.permute.xlu0 %1396
        %s1399 = sor.u32 256, 104
        %1400 = vbcast.lane.b32.xlu0 %v1346, %s1399
        %v1401 = vpop.permute.xlu0 %1400
        %s1403 = sor.u32 256, 112
        %1404 = vbcast.lane.b32.xlu0 %v1346, %s1403
        %v1405 = vpop.permute.xlu0 %1404
        %s1407 = sor.u32 256, 120
        %1408 = vbcast.lane.b32.xlu0 %v1346, %s1407
        %v1409 = vpop.permute.xlu0 %1408
        %v1410 = vlaneseq
        %v1411 = vshrl.u32 %v1410, 7
        %v1412 = vsub.s32 2, %v1411
        %v1413 = vrot.slane %v1275, %v1412
        %1415 = vbcast.lane.b32.xlu0 %v1413, 256
        %v1416 = vpop.permute.xlu0 %1415
        %s1418 = sor.u32 256, 8
        %1419 = vbcast.lane.b32.xlu0 %v1413, %s1418
        %v1420 = vpop.permute.xlu0 %1419
        %s1422 = sor.u32 256, 16
        %1423 = vbcast.lane.b32.xlu0 %v1413, %s1422
        %v1424 = vpop.permute.xlu0 %1423
        %s1426 = sor.u32 256, 24
        %1427 = vbcast.lane.b32.xlu0 %v1413, %s1426
        %v1428 = vpop.permute.xlu0 %1427
        %s1430 = sor.u32 256, 32
        %1431 = vbcast.lane.b32.xlu0 %v1413, %s1430
        %v1432 = vpop.permute.xlu0 %1431
        %s1434 = sor.u32 256, 40
        %1435 = vbcast.lane.b32.xlu0 %v1413, %s1434
        %v1436 = vpop.permute.xlu0 %1435
        %s1438 = sor.u32 256, 48
        %1439 = vbcast.lane.b32.xlu0 %v1413, %s1438
        %v1440 = vpop.permute.xlu0 %1439
        %s1442 = sor.u32 256, 56
        %1443 = vbcast.lane.b32.xlu0 %v1413, %s1442
        %v1444 = vpop.permute.xlu0 %1443
        %s1446 = sor.u32 256, 64
        %1447 = vbcast.lane.b32.xlu0 %v1413, %s1446
        %v1448 = vpop.permute.xlu0 %1447
        %s1450 = sor.u32 256, 72
        %1451 = vbcast.lane.b32.xlu0 %v1413, %s1450
        %v1452 = vpop.permute.xlu0 %1451
        %s1454 = sor.u32 256, 80
        %1455 = vbcast.lane.b32.xlu0 %v1413, %s1454
        %v1456 = vpop.permute.xlu0 %1455
        %s1458 = sor.u32 256, 88
        %1459 = vbcast.lane.b32.xlu0 %v1413, %s1458
        %v1460 = vpop.permute.xlu0 %1459
        %s1462 = sor.u32 256, 96
        %1463 = vbcast.lane.b32.xlu0 %v1413, %s1462
        %v1464 = vpop.permute.xlu0 %1463
        %s1466 = sor.u32 256, 104
        %1467 = vbcast.lane.b32.xlu0 %v1413, %s1466
        %v1468 = vpop.permute.xlu0 %1467
        %s1470 = sor.u32 256, 112
        %1471 = vbcast.lane.b32.xlu0 %v1413, %s1470
        %v1472 = vpop.permute.xlu0 %1471
        %s1474 = sor.u32 256, 120
        %1475 = vbcast.lane.b32.xlu0 %v1413, %s1474
        %v1476 = vpop.permute.xlu0 %1475
        %v1477 = vlaneseq
        %v1478 = vshrl.u32 %v1477, 7
        %v1479 = vsub.s32 3, %v1478
        %v1480 = vrot.slane %v1275, %v1479
        %1482 = vbcast.lane.b32.xlu0 %v1480, 256
        %v1483 = vpop.permute.xlu0 %1482
        %s1485 = sor.u32 256, 8
        %1486 = vbcast.lane.b32.xlu0 %v1480, %s1485
        %v1487 = vpop.permute.xlu0 %1486
        %s1489 = sor.u32 256, 16
        %1490 = vbcast.lane.b32.xlu0 %v1480, %s1489
        %v1491 = vpop.permute.xlu0 %1490
        %s1493 = sor.u32 256, 24
        %1494 = vbcast.lane.b32.xlu0 %v1480, %s1493
        %v1495 = vpop.permute.xlu0 %1494
        %s1497 = sor.u32 256, 32
        %1498 = vbcast.lane.b32.xlu0 %v1480, %s1497
        %v1499 = vpop.permute.xlu0 %1498
        %s1501 = sor.u32 256, 40
        %1502 = vbcast.lane.b32.xlu0 %v1480, %s1501
        %v1503 = vpop.permute.xlu0 %1502
        %s1505 = sor.u32 256, 48
        %1506 = vbcast.lane.b32.xlu0 %v1480, %s1505
        %v1507 = vpop.permute.xlu0 %1506
        %s1509 = sor.u32 256, 56
        %1510 = vbcast.lane.b32.xlu0 %v1480, %s1509
        %v1511 = vpop.permute.xlu0 %1510
        %s1513 = sor.u32 256, 64
        %1514 = vbcast.lane.b32.xlu0 %v1480, %s1513
        %v1515 = vpop.permute.xlu0 %1514
        %s1517 = sor.u32 256, 72
        %1518 = vbcast.lane.b32.xlu0 %v1480, %s1517
        %v1519 = vpop.permute.xlu0 %1518
        %s1521 = sor.u32 256, 80
        %1522 = vbcast.lane.b32.xlu0 %v1480, %s1521
        %v1523 = vpop.permute.xlu0 %1522
        %s1525 = sor.u32 256, 88
        %1526 = vbcast.lane.b32.xlu0 %v1480, %s1525
        %v1527 = vpop.permute.xlu0 %1526
        %s1529 = sor.u32 256, 96
        %1530 = vbcast.lane.b32.xlu0 %v1480, %s1529
        %v1531 = vpop.permute.xlu0 %1530
        %s1533 = sor.u32 256, 104
        %1534 = vbcast.lane.b32.xlu0 %v1480, %s1533
        %v1535 = vpop.permute.xlu0 %1534
        %s1537 = sor.u32 256, 112
        %1538 = vbcast.lane.b32.xlu0 %v1480, %s1537
        %v1539 = vpop.permute.xlu0 %1538
        %s1541 = sor.u32 256, 120
        %1542 = vbcast.lane.b32.xlu0 %v1480, %s1541
        %v1543 = vpop.permute.xlu0 %1542
        %v1544 = vlaneseq
        %v1545 = vshrl.u32 %v1544, 7
        %v1546 = vsub.s32 4, %v1545
        %v1547 = vrot.slane %v1275, %v1546
        %1549 = vbcast.lane.b32.xlu0 %v1547, 256
        %v1550 = vpop.permute.xlu0 %1549
        %s1552 = sor.u32 256, 8
        %1553 = vbcast.lane.b32.xlu0 %v1547, %s1552
        %v1554 = vpop.permute.xlu0 %1553
        %s1556 = sor.u32 256, 16
        %1557 = vbcast.lane.b32.xlu0 %v1547, %s1556
        %v1558 = vpop.permute.xlu0 %1557
        %s1560 = sor.u32 256, 24
        %1561 = vbcast.lane.b32.xlu0 %v1547, %s1560
        %v1562 = vpop.permute.xlu0 %1561
        %s1564 = sor.u32 256, 32
        %1565 = vbcast.lane.b32.xlu0 %v1547, %s1564
        %v1566 = vpop.permute.xlu0 %1565
        %s1568 = sor.u32 256, 40
        %1569 = vbcast.lane.b32.xlu0 %v1547, %s1568
        %v1570 = vpop.permute.xlu0 %1569
        %s1572 = sor.u32 256, 48
        %1573 = vbcast.lane.b32.xlu0 %v1547, %s1572
        %v1574 = vpop.permute.xlu0 %1573
        %s1576 = sor.u32 256, 56
        %1577 = vbcast.lane.b32.xlu0 %v1547, %s1576
        %v1578 = vpop.permute.xlu0 %1577
        %s1580 = sor.u32 256, 64
        %1581 = vbcast.lane.b32.xlu0 %v1547, %s1580
        %v1582 = vpop.permute.xlu0 %1581
        %s1584 = sor.u32 256, 72
        %1585 = vbcast.lane.b32.xlu0 %v1547, %s1584
        %v1586 = vpop.permute.xlu0 %1585
        %s1588 = sor.u32 256, 80
        %1589 = vbcast.lane.b32.xlu0 %v1547, %s1588
        %v1590 = vpop.permute.xlu0 %1589
        %s1592 = sor.u32 256, 88
        %1593 = vbcast.lane.b32.xlu0 %v1547, %s1592
        %v1594 = vpop.permute.xlu0 %1593
        %s1596 = sor.u32 256, 96
        %1597 = vbcast.lane.b32.xlu0 %v1547, %s1596
        %v1598 = vpop.permute.xlu0 %1597
        %s1600 = sor.u32 256, 104
        %1601 = vbcast.lane.b32.xlu0 %v1547, %s1600
        %v1602 = vpop.permute.xlu0 %1601
        %s1604 = sor.u32 256, 112
        %1605 = vbcast.lane.b32.xlu0 %v1547, %s1604
        %v1606 = vpop.permute.xlu0 %1605
        %s1608 = sor.u32 256, 120
        %1609 = vbcast.lane.b32.xlu0 %v1547, %s1608
        %v1610 = vpop.permute.xlu0 %1609
        %v1611 = vlaneseq
        %v1612 = vshrl.u32 %v1611, 7
        %v1613 = vsub.s32 5, %v1612
        %v1614 = vrot.slane %v1275, %v1613
        %1616 = vbcast.lane.b32.xlu0 %v1614, 256
        %v1617 = vpop.permute.xlu0 %1616
        %s1619 = sor.u32 256, 8
        %1620 = vbcast.lane.b32.xlu0 %v1614, %s1619
        %v1621 = vpop.permute.xlu0 %1620
        %s1623 = sor.u32 256, 16
        %1624 = vbcast.lane.b32.xlu0 %v1614, %s1623
        %v1625 = vpop.permute.xlu0 %1624
        %s1627 = sor.u32 256, 24
        %1628 = vbcast.lane.b32.xlu0 %v1614, %s1627
        %v1629 = vpop.permute.xlu0 %1628
        %s1631 = sor.u32 256, 32
        %1632 = vbcast.lane.b32.xlu0 %v1614, %s1631
        %v1633 = vpop.permute.xlu0 %1632
        %s1635 = sor.u32 256, 40
        %1636 = vbcast.lane.b32.xlu0 %v1614, %s1635
        %v1637 = vpop.permute.xlu0 %1636
        %s1639 = sor.u32 256, 48
        %1640 = vbcast.lane.b32.xlu0 %v1614, %s1639
        %v1641 = vpop.permute.xlu0 %1640
        %s1643 = sor.u32 256, 56
        %1644 = vbcast.lane.b32.xlu0 %v1614, %s1643
        %v1645 = vpop.permute.xlu0 %1644
        %s1647 = sor.u32 256, 64
        %1648 = vbcast.lane.b32.xlu0 %v1614, %s1647
        %v1649 = vpop.permute.xlu0 %1648
        %s1651 = sor.u32 256, 72
        %1652 = vbcast.lane.b32.xlu0 %v1614, %s1651
        %v1653 = vpop.permute.xlu0 %1652
        %s1655 = sor.u32 256, 80
        %1656 = vbcast.lane.b32.xlu0 %v1614, %s1655
        %v1657 = vpop.permute.xlu0 %1656
        %s1659 = sor.u32 256, 88
        %1660 = vbcast.lane.b32.xlu0 %v1614, %s1659
        %v1661 = vpop.permute.xlu0 %1660
        %s1663 = sor.u32 256, 96
        %1664 = vbcast.lane.b32.xlu0 %v1614, %s1663
        %v1665 = vpop.permute.xlu0 %1664
        %s1667 = sor.u32 256, 104
        %1668 = vbcast.lane.b32.xlu0 %v1614, %s1667
        %v1669 = vpop.permute.xlu0 %1668
        %s1671 = sor.u32 256, 112
        %1672 = vbcast.lane.b32.xlu0 %v1614, %s1671
        %v1673 = vpop.permute.xlu0 %1672
        %s1675 = sor.u32 256, 120
        %1676 = vbcast.lane.b32.xlu0 %v1614, %s1675
        %v1677 = vpop.permute.xlu0 %1676
        %v1678 = vlaneseq
        %v1679 = vshrl.u32 %v1678, 7
        %v1680 = vsub.s32 6, %v1679
        %v1681 = vrot.slane %v1275, %v1680
        %1683 = vbcast.lane.b32.xlu0 %v1681, 256
        %v1684 = vpop.permute.xlu0 %1683
        %s1686 = sor.u32 256, 8
        %1687 = vbcast.lane.b32.xlu0 %v1681, %s1686
        %v1688 = vpop.permute.xlu0 %1687
        %s1690 = sor.u32 256, 16
        %1691 = vbcast.lane.b32.xlu0 %v1681, %s1690
        %v1692 = vpop.permute.xlu0 %1691
        %s1694 = sor.u32 256, 24
        %1695 = vbcast.lane.b32.xlu0 %v1681, %s1694
        %v1696 = vpop.permute.xlu0 %1695
        %s1698 = sor.u32 256, 32
        %1699 = vbcast.lane.b32.xlu0 %v1681, %s1698
        %v1700 = vpop.permute.xlu0 %1699
        %s1702 = sor.u32 256, 40
        %1703 = vbcast.lane.b32.xlu0 %v1681, %s1702
        %v1704 = vpop.permute.xlu0 %1703
        %s1706 = sor.u32 256, 48
        %1707 = vbcast.lane.b32.xlu0 %v1681, %s1706
        %v1708 = vpop.permute.xlu0 %1707
        %s1710 = sor.u32 256, 56
        %1711 = vbcast.lane.b32.xlu0 %v1681, %s1710
        %v1712 = vpop.permute.xlu0 %1711
        %s1714 = sor.u32 256, 64
        %1715 = vbcast.lane.b32.xlu0 %v1681, %s1714
        %v1716 = vpop.permute.xlu0 %1715
        %s1718 = sor.u32 256, 72
        %1719 = vbcast.lane.b32.xlu0 %v1681, %s1718
        %v1720 = vpop.permute.xlu0 %1719
        %s1722 = sor.u32 256, 80
        %1723 = vbcast.lane.b32.xlu0 %v1681, %s1722
        %v1724 = vpop.permute.xlu0 %1723
        %s1726 = sor.u32 256, 88
        %1727 = vbcast.lane.b32.xlu0 %v1681, %s1726
        %v1728 = vpop.permute.xlu0 %1727
        %s1730 = sor.u32 256, 96
        %1731 = vbcast.lane.b32.xlu0 %v1681, %s1730
        %v1732 = vpop.permute.xlu0 %1731
        %s1734 = sor.u32 256, 104
        %1735 = vbcast.lane.b32.xlu0 %v1681, %s1734
        %v1736 = vpop.permute.xlu0 %1735
        %s1738 = sor.u32 256, 112
        %1739 = vbcast.lane.b32.xlu0 %v1681, %s1738
        %v1740 = vpop.permute.xlu0 %1739
        %s1742 = sor.u32 256, 120
        %1743 = vbcast.lane.b32.xlu0 %v1681, %s1742
        %v1744 = vpop.permute.xlu0 %1743
        %v1745 = vlaneseq
        %v1746 = vshrl.u32 %v1745, 7
        %v1747 = vsub.s32 7, %v1746
        %v1748 = vrot.slane %v1275, %v1747
        %1750 = vbcast.lane.b32.xlu0 %v1748, 256
        %v1751 = vpop.permute.xlu0 %1750
        %s1753 = sor.u32 256, 8
        %1754 = vbcast.lane.b32.xlu0 %v1748, %s1753
        %v1755 = vpop.permute.xlu0 %1754
        %s1757 = sor.u32 256, 16
        %1758 = vbcast.lane.b32.xlu0 %v1748, %s1757
        %v1759 = vpop.permute.xlu0 %1758
        %s1761 = sor.u32 256, 24
        %1762 = vbcast.lane.b32.xlu0 %v1748, %s1761
        %v1763 = vpop.permute.xlu0 %1762
        %s1765 = sor.u32 256, 32
        %1766 = vbcast.lane.b32.xlu0 %v1748, %s1765
        %v1767 = vpop.permute.xlu0 %1766
        %s1769 = sor.u32 256, 40
        %1770 = vbcast.lane.b32.xlu0 %v1748, %s1769
        %v1771 = vpop.permute.xlu0 %1770
        %s1773 = sor.u32 256, 48
        %1774 = vbcast.lane.b32.xlu0 %v1748, %s1773
        %v1775 = vpop.permute.xlu0 %1774
        %s1777 = sor.u32 256, 56
        %1778 = vbcast.lane.b32.xlu0 %v1748, %s1777
        %v1779 = vpop.permute.xlu0 %1778
        %s1781 = sor.u32 256, 64
        %1782 = vbcast.lane.b32.xlu0 %v1748, %s1781
        %v1783 = vpop.permute.xlu0 %1782
        %s1785 = sor.u32 256, 72
        %1786 = vbcast.lane.b32.xlu0 %v1748, %s1785
        %v1787 = vpop.permute.xlu0 %1786
        %s1789 = sor.u32 256, 80
        %1790 = vbcast.lane.b32.xlu0 %v1748, %s1789
        %v1791 = vpop.permute.xlu0 %1790
        %s1793 = sor.u32 256, 88
        %1794 = vbcast.lane.b32.xlu0 %v1748, %s1793
        %v1795 = vpop.permute.xlu0 %1794
        %s1797 = sor.u32 256, 96
        %1798 = vbcast.lane.b32.xlu0 %v1748, %s1797
        %v1799 = vpop.permute.xlu0 %1798
        %s1801 = sor.u32 256, 104
        %1802 = vbcast.lane.b32.xlu0 %v1748, %s1801
        %v1803 = vpop.permute.xlu0 %1802
        %s1805 = sor.u32 256, 112
        %1806 = vbcast.lane.b32.xlu0 %v1748, %s1805
        %v1807 = vpop.permute.xlu0 %1806
        %s1809 = sor.u32 256, 120
        %1810 = vbcast.lane.b32.xlu0 %v1748, %s1809
        %v1811 = vpop.permute.xlu0 %1810
        %v1812 = vsub.f32 %v271, %v1282
        %v1813 = vsub.f32 %v272, %v1286
        %v1814 = vsub.f32 %v273, %v1290
        %v1815 = vsub.f32 %v274, %v1294
        %v1816 = vsub.f32 %v275, %v1298
        %v1817 = vsub.f32 %v276, %v1302
        %v1818 = vsub.f32 %v277, %v1306
        %v1819 = vsub.f32 %v278, %v1310
        %v1820 = vsub.f32 %v279, %v1314
        %v1821 = vsub.f32 %v280, %v1318
        %v1822 = vsub.f32 %v281, %v1322
        %v1823 = vsub.f32 %v282, %v1326
        %v1824 = vsub.f32 %v283, %v1330
        %v1825 = vsub.f32 %v284, %v1334
        %v1826 = vsub.f32 %v285, %v1338
        %v1827 = vsub.f32 %v286, %v1342
        %v1828 = vsub.f32 %v271, %v1349
        %v1829 = vsub.f32 %v272, %v1353
        %v1830 = vsub.f32 %v273, %v1357
        %v1831 = vsub.f32 %v274, %v1361
        %v1832 = vsub.f32 %v275, %v1365
        %v1833 = vsub.f32 %v276, %v1369
        %v1834 = vsub.f32 %v277, %v1373
        %v1835 = vsub.f32 %v278, %v1377
        %v1836 = vsub.f32 %v279, %v1381
        %v1837 = vsub.f32 %v280, %v1385
        %v1838 = vsub.f32 %v281, %v1389
        %v1839 = vsub.f32 %v282, %v1393
        %v1840 = vsub.f32 %v283, %v1397
        %v1841 = vsub.f32 %v284, %v1401
        %v1842 = vsub.f32 %v285, %v1405
        %v1843 = vsub.f32 %v286, %v1409
        %v1844 = vsub.f32 %v271, %v1416
        %v1845 = vsub.f32 %v272, %v1420
        %v1846 = vsub.f32 %v273, %v1424
        %v1847 = vsub.f32 %v274, %v1428
        %v1848 = vsub.f32 %v275, %v1432
        %v1849 = vsub.f32 %v276, %v1436
        %v1850 = vsub.f32 %v277, %v1440
        %v1851 = vsub.f32 %v278, %v1444
        %v1852 = vsub.f32 %v279, %v1448
        %v1853 = vsub.f32 %v280, %v1452
        %v1854 = vsub.f32 %v281, %v1456
        %v1855 = vsub.f32 %v282, %v1460
        %v1856 = vsub.f32 %v283, %v1464
        %v1857 = vsub.f32 %v284, %v1468
        %v1858 = vsub.f32 %v285, %v1472
        %v1859 = vsub.f32 %v286, %v1476
        %v1860 = vsub.f32 %v271, %v1483
        %v1861 = vsub.f32 %v272, %v1487
        %v1862 = vsub.f32 %v273, %v1491
        %v1863 = vsub.f32 %v274, %v1495
        %v1864 = vsub.f32 %v275, %v1499
        %v1865 = vsub.f32 %v276, %v1503
        %v1866 = vsub.f32 %v277, %v1507
        %v1867 = vsub.f32 %v278, %v1511
        %v1868 = vsub.f32 %v279, %v1515
        %v1869 = vsub.f32 %v280, %v1519
        %v1870 = vsub.f32 %v281, %v1523
        %v1871 = vsub.f32 %v282, %v1527
        %v1872 = vsub.f32 %v283, %v1531
        %v1873 = vsub.f32 %v284, %v1535
        %v1874 = vsub.f32 %v285, %v1539
        %v1875 = vsub.f32 %v286, %v1543
        %v1876 = vsub.f32 %v271, %v1550
        %v1877 = vsub.f32 %v272, %v1554
        %v1878 = vsub.f32 %v273, %v1558
        %v1879 = vsub.f32 %v274, %v1562
        %v1880 = vsub.f32 %v275, %v1566
        %v1881 = vsub.f32 %v276, %v1570
        %v1882 = vsub.f32 %v277, %v1574
        %v1883 = vsub.f32 %v278, %v1578
        %v1884 = vsub.f32 %v279, %v1582
        %v1885 = vsub.f32 %v280, %v1586
        %v1886 = vsub.f32 %v281, %v1590
        %v1887 = vsub.f32 %v282, %v1594
        %v1888 = vsub.f32 %v283, %v1598
        %v1889 = vsub.f32 %v284, %v1602
        %v1890 = vsub.f32 %v285, %v1606
        %v1891 = vsub.f32 %v286, %v1610
        %v1892 = vsub.f32 %v271, %v1617
        %v1893 = vsub.f32 %v272, %v1621
        %v1894 = vsub.f32 %v273, %v1625
        %v1895 = vsub.f32 %v274, %v1629
        %v1896 = vsub.f32 %v275, %v1633
        %v1897 = vsub.f32 %v276, %v1637
        %v1898 = vsub.f32 %v277, %v1641
        %v1899 = vsub.f32 %v278, %v1645
        %v1900 = vsub.f32 %v279, %v1649
        %v1901 = vsub.f32 %v280, %v1653
        %v1902 = vsub.f32 %v281, %v1657
        %v1903 = vsub.f32 %v282, %v1661
        %v1904 = vsub.f32 %v283, %v1665
        %v1905 = vsub.f32 %v284, %v1669
        %v1906 = vsub.f32 %v285, %v1673
        %v1907 = vsub.f32 %v286, %v1677
        %v1908 = vsub.f32 %v271, %v1684
        %v1909 = vsub.f32 %v272, %v1688
        %v1910 = vsub.f32 %v273, %v1692
        %v1911 = vsub.f32 %v274, %v1696
        %v1912 = vsub.f32 %v275, %v1700
        %v1913 = vsub.f32 %v276, %v1704
        %v1914 = vsub.f32 %v277, %v1708
        %v1915 = vsub.f32 %v278, %v1712
        %v1916 = vsub.f32 %v279, %v1716
        %v1917 = vsub.f32 %v280, %v1720
        %v1918 = vsub.f32 %v281, %v1724
        %v1919 = vsub.f32 %v282, %v1728
        %v1920 = vsub.f32 %v283, %v1732
        %v1921 = vsub.f32 %v284, %v1736
        %v1922 = vsub.f32 %v285, %v1740
        %v1923 = vsub.f32 %v286, %v1744
        %v1924 = vsub.f32 %v271, %v1751
        %v1925 = vsub.f32 %v272, %v1755
        %v1926 = vsub.f32 %v273, %v1759
        %v1927 = vsub.f32 %v274, %v1763
        %v1928 = vsub.f32 %v275, %v1767
        %v1929 = vsub.f32 %v276, %v1771
        %v1930 = vsub.f32 %v277, %v1775
        %v1931 = vsub.f32 %v278, %v1779
        %v1932 = vsub.f32 %v279, %v1783
        %v1933 = vsub.f32 %v280, %v1787
        %v1934 = vsub.f32 %v281, %v1791
        %v1935 = vsub.f32 %v282, %v1795
        %v1936 = vsub.f32 %v283, %v1799
        %v1937 = vsub.f32 %v284, %v1803
        %v1938 = vsub.f32 %v285, %v1807
        %v1939 = vsub.f32 %v286, %v1811
        %v1940 = vand.u32 2147483647, %v1812
        %v1941 = vand.u32 2147483647, %v1813
        %v1942 = vand.u32 2147483647, %v1814
        %v1943 = vand.u32 2147483647, %v1815
        %v1944 = vand.u32 2147483647, %v1816
        %v1945 = vand.u32 2147483647, %v1817
        %v1946 = vand.u32 2147483647, %v1818
        %v1947 = vand.u32 2147483647, %v1819
        %v1948 = vand.u32 2147483647, %v1820
        %v1949 = vand.u32 2147483647, %v1821
        %v1950 = vand.u32 2147483647, %v1822
        %v1951 = vand.u32 2147483647, %v1823
        %v1952 = vand.u32 2147483647, %v1824
        %v1953 = vand.u32 2147483647, %v1825
        %v1954 = vand.u32 2147483647, %v1826
        %v1955 = vand.u32 2147483647, %v1827
        %v1956 = vand.u32 2147483647, %v1828
        %v1957 = vand.u32 2147483647, %v1829
        %v1958 = vand.u32 2147483647, %v1830
        %v1959 = vand.u32 2147483647, %v1831
        %v1960 = vand.u32 2147483647, %v1832
        %v1961 = vand.u32 2147483647, %v1833
        %v1962 = vand.u32 2147483647, %v1834
        %v1963 = vand.u32 2147483647, %v1835
        %v1964 = vand.u32 2147483647, %v1836
        %v1965 = vand.u32 2147483647, %v1837
        %v1966 = vand.u32 2147483647, %v1838
        %v1967 = vand.u32 2147483647, %v1839
        %v1968 = vand.u32 2147483647, %v1840
        %v1969 = vand.u32 2147483647, %v1841
        %v1970 = vand.u32 2147483647, %v1842
        %v1971 = vand.u32 2147483647, %v1843
        %v1972 = vand.u32 2147483647, %v1844
        %v1973 = vand.u32 2147483647, %v1845
        %v1974 = vand.u32 2147483647, %v1846
        %v1975 = vand.u32 2147483647, %v1847
        %v1976 = vand.u32 2147483647, %v1848
        %v1977 = vand.u32 2147483647, %v1849
        %v1978 = vand.u32 2147483647, %v1850
        %v1979 = vand.u32 2147483647, %v1851
        %v1980 = vand.u32 2147483647, %v1852
        %v1981 = vand.u32 2147483647, %v1853
        %v1982 = vand.u32 2147483647, %v1854
        %v1983 = vand.u32 2147483647, %v1855
        %v1984 = vand.u32 2147483647, %v1856
        %v1985 = vand.u32 2147483647, %v1857
        %v1986 = vand.u32 2147483647, %v1858
        %v1987 = vand.u32 2147483647, %v1859
        %v1988 = vand.u32 2147483647, %v1860
        %v1989 = vand.u32 2147483647, %v1861
        %v1990 = vand.u32 2147483647, %v1862
        %v1991 = vand.u32 2147483647, %v1863
        %v1992 = vand.u32 2147483647, %v1864
        %v1993 = vand.u32 2147483647, %v1865
        %v1994 = vand.u32 2147483647, %v1866
        %v1995 = vand.u32 2147483647, %v1867
        %v1996 = vand.u32 2147483647, %v1868
        %v1997 = vand.u32 2147483647, %v1869
        %v1998 = vand.u32 2147483647, %v1870
        %v1999 = vand.u32 2147483647, %v1871
        %v2000 = vand.u32 2147483647, %v1872
        %v2001 = vand.u32 2147483647, %v1873
        %v2002 = vand.u32 2147483647, %v1874
        %v2003 = vand.u32 2147483647, %v1875
        %v2004 = vand.u32 2147483647, %v1876
        %v2005 = vand.u32 2147483647, %v1877
        %v2006 = vand.u32 2147483647, %v1878
        %v2007 = vand.u32 2147483647, %v1879
        %v2008 = vand.u32 2147483647, %v1880
        %v2009 = vand.u32 2147483647, %v1881
        %v2010 = vand.u32 2147483647, %v1882
        %v2011 = vand.u32 2147483647, %v1883
        %v2012 = vand.u32 2147483647, %v1884
        %v2013 = vand.u32 2147483647, %v1885
        %v2014 = vand.u32 2147483647, %v1886
        %v2015 = vand.u32 2147483647, %v1887
        %v2016 = vand.u32 2147483647, %v1888
        %v2017 = vand.u32 2147483647, %v1889
        %v2018 = vand.u32 2147483647, %v1890
        %v2019 = vand.u32 2147483647, %v1891
        %v2020 = vand.u32 2147483647, %v1892
        %v2021 = vand.u32 2147483647, %v1893
        %v2022 = vand.u32 2147483647, %v1894
        %v2023 = vand.u32 2147483647, %v1895
        %v2024 = vand.u32 2147483647, %v1896
        %v2025 = vand.u32 2147483647, %v1897
        %v2026 = vand.u32 2147483647, %v1898
        %v2027 = vand.u32 2147483647, %v1899
        %v2028 = vand.u32 2147483647, %v1900
        %v2029 = vand.u32 2147483647, %v1901
        %v2030 = vand.u32 2147483647, %v1902
        %v2031 = vand.u32 2147483647, %v1903
        %v2032 = vand.u32 2147483647, %v1904
        %v2033 = vand.u32 2147483647, %v1905
        %v2034 = vand.u32 2147483647, %v1906
        %v2035 = vand.u32 2147483647, %v1907
        %v2036 = vand.u32 2147483647, %v1908
        %v2037 = vand.u32 2147483647, %v1909
        %v2038 = vand.u32 2147483647, %v1910
        %v2039 = vand.u32 2147483647, %v1911
        %v2040 = vand.u32 2147483647, %v1912
        %v2041 = vand.u32 2147483647, %v1913
        %v2042 = vand.u32 2147483647, %v1914
        %v2043 = vand.u32 2147483647, %v1915
        %v2044 = vand.u32 2147483647, %v1916
        %v2045 = vand.u32 2147483647, %v1917
        %v2046 = vand.u32 2147483647, %v1918
        %v2047 = vand.u32 2147483647, %v1919
        %v2048 = vand.u32 2147483647, %v1920
        %v2049 = vand.u32 2147483647, %v1921
        %v2050 = vand.u32 2147483647, %v1922
        %v2051 = vand.u32 2147483647, %v1923
        %v2052 = vand.u32 2147483647, %v1924
        %v2053 = vand.u32 2147483647, %v1925
        %v2054 = vand.u32 2147483647, %v1926
        %v2055 = vand.u32 2147483647, %v1927
        %v2056 = vand.u32 2147483647, %v1928
        %v2057 = vand.u32 2147483647, %v1929
        %v2058 = vand.u32 2147483647, %v1930
        %v2059 = vand.u32 2147483647, %v1931
        %v2060 = vand.u32 2147483647, %v1932
        %v2061 = vand.u32 2147483647, %v1933
        %v2062 = vand.u32 2147483647, %v1934
        %v2063 = vand.u32 2147483647, %v1935
        %v2064 = vand.u32 2147483647, %v1936
        %v2065 = vand.u32 2147483647, %v1937
        %v2066 = vand.u32 2147483647, %v1938
        %v2067 = vand.u32 2147483647, %v1939
        %s2068 = scalar_lea.vmem [#allocation2], 8
        %v2069 = vld [vmem:[%s2068] sm:$0xff]
        %v2070 = vadd.f32 %v1940, %v1941
        %v2071 = vadd.f32 %v2070, %v1942
        %v2072 = vadd.f32 %v2071, %v1943
        %v2073 = vadd.f32 %v2072, %v1944
        %v2074 = vadd.f32 %v2073, %v1945
        %v2075 = vadd.f32 %v2074, %v1946
        %v2076 = vadd.f32 %v2075, %v1947
        %v2077 = vadd.f32 %v2076, %v1948
        %v2078 = vadd.f32 %v2077, %v1949
        %v2079 = vadd.f32 %v2078, %v1950
        %v2080 = vadd.f32 %v2079, %v1951
        %v2081 = vadd.f32 %v2080, %v1952
        %v2082 = vadd.f32 %v2081, %v1953
        %v2083 = vadd.f32 %v2082, %v1954
        %v2084 = vadd.f32 %v2083, %v1955
        %v2085 = vrot.slane %v2084, 4
        %v2086 = vadd.f32 %v2084, %v2085
        %v2087 = vrot.slane %v2086, 2
        %v2088 = vadd.f32 %v2086, %v2087
        %v2089 = vrot.slane %v2088, 1
        %v2090 = vadd.f32 %v2088, %v2089
        %v2091 = vadd.f32 %v1956, %v1957
        %v2092 = vadd.f32 %v2091, %v1958
        %v2093 = vadd.f32 %v2092, %v1959
        %v2094 = vadd.f32 %v2093, %v1960
        %v2095 = vadd.f32 %v2094, %v1961
        %v2096 = vadd.f32 %v2095, %v1962
        %v2097 = vadd.f32 %v2096, %v1963
        %v2098 = vadd.f32 %v2097, %v1964
        %v2099 = vadd.f32 %v2098, %v1965
        %v2100 = vadd.f32 %v2099, %v1966
        %v2101 = vadd.f32 %v2100, %v1967
        %v2102 = vadd.f32 %v2101, %v1968
        %v2103 = vadd.f32 %v2102, %v1969
        %v2104 = vadd.f32 %v2103, %v1970
        %v2105 = vadd.f32 %v2104, %v1971
        %v2106 = vrot.slane %v2105, 4
        %v2107 = vadd.f32 %v2105, %v2106
        %v2108 = vrot.slane %v2107, 2
        %v2109 = vadd.f32 %v2107, %v2108
        %v2110 = vrot.slane %v2109, 1
        %v2111 = vadd.f32 %v2109, %v2110
        %v2112 = vadd.f32 %v1972, %v1973
        %v2113 = vadd.f32 %v2112, %v1974
        %v2114 = vadd.f32 %v2113, %v1975
        %v2115 = vadd.f32 %v2114, %v1976
        %v2116 = vadd.f32 %v2115, %v1977
        %v2117 = vadd.f32 %v2116, %v1978
        %v2118 = vadd.f32 %v2117, %v1979
        %v2119 = vadd.f32 %v2118, %v1980
        %v2120 = vadd.f32 %v2119, %v1981
        %v2121 = vadd.f32 %v2120, %v1982
        %v2122 = vadd.f32 %v2121, %v1983
        %v2123 = vadd.f32 %v2122, %v1984
        %v2124 = vadd.f32 %v2123, %v1985
        %v2125 = vadd.f32 %v2124, %v1986
        %v2126 = vadd.f32 %v2125, %v1987
        %v2127 = vrot.slane %v2126, 4
        %v2128 = vadd.f32 %v2126, %v2127
        %v2129 = vrot.slane %v2128, 2
        %v2130 = vadd.f32 %v2128, %v2129
        %v2131 = vrot.slane %v2130, 1
        %v2132 = vadd.f32 %v2130, %v2131
        %v2133 = vadd.f32 %v1988, %v1989
        %v2134 = vadd.f32 %v2133, %v1990
        %v2135 = vadd.f32 %v2134, %v1991
        %v2136 = vadd.f32 %v2135, %v1992
        %v2137 = vadd.f32 %v2136, %v1993
        %v2138 = vadd.f32 %v2137, %v1994
        %v2139 = vadd.f32 %v2138, %v1995
        %v2140 = vadd.f32 %v2139, %v1996
        %v2141 = vadd.f32 %v2140, %v1997
        %v2142 = vadd.f32 %v2141, %v1998
        %v2143 = vadd.f32 %v2142, %v1999
        %v2144 = vadd.f32 %v2143, %v2000
        %v2145 = vadd.f32 %v2144, %v2001
        %v2146 = vadd.f32 %v2145, %v2002
        %v2147 = vadd.f32 %v2146, %v2003
        %v2148 = vrot.slane %v2147, 4
        %v2149 = vadd.f32 %v2147, %v2148
        %v2150 = vrot.slane %v2149, 2
        %v2151 = vadd.f32 %v2149, %v2150
        %v2152 = vrot.slane %v2151, 1
        %v2153 = vadd.f32 %v2151, %v2152
        %v2154 = vadd.f32 %v2004, %v2005
        %v2155 = vadd.f32 %v2154, %v2006
        %v2156 = vadd.f32 %v2155, %v2007
        %v2157 = vadd.f32 %v2156, %v2008
        %v2158 = vadd.f32 %v2157, %v2009
        %v2159 = vadd.f32 %v2158, %v2010
        %v2160 = vadd.f32 %v2159, %v2011
        %v2161 = vadd.f32 %v2160, %v2012
        %v2162 = vadd.f32 %v2161, %v2013
        %v2163 = vadd.f32 %v2162, %v2014
        %v2164 = vadd.f32 %v2163, %v2015
        %v2165 = vadd.f32 %v2164, %v2016
        %v2166 = vadd.f32 %v2165, %v2017
        %v2167 = vadd.f32 %v2166, %v2018
        %v2168 = vadd.f32 %v2167, %v2019
        %v2169 = vrot.slane %v2168, 4
        %v2170 = vadd.f32 %v2168, %v2169
        %v2171 = vrot.slane %v2170, 2
        %v2172 = vadd.f32 %v2170, %v2171
        %v2173 = vrot.slane %v2172, 1
        %v2174 = vadd.f32 %v2172, %v2173
        %v2175 = vadd.f32 %v2020, %v2021
        %v2176 = vadd.f32 %v2175, %v2022
        %v2177 = vadd.f32 %v2176, %v2023
        %v2178 = vadd.f32 %v2177, %v2024
        %v2179 = vadd.f32 %v2178, %v2025
        %v2180 = vadd.f32 %v2179, %v2026
        %v2181 = vadd.f32 %v2180, %v2027
        %v2182 = vadd.f32 %v2181, %v2028
        %v2183 = vadd.f32 %v2182, %v2029
        %v2184 = vadd.f32 %v2183, %v2030
        %v2185 = vadd.f32 %v2184, %v2031
        %v2186 = vadd.f32 %v2185, %v2032
        %v2187 = vadd.f32 %v2186, %v2033
        %v2188 = vadd.f32 %v2187, %v2034
        %v2189 = vadd.f32 %v2188, %v2035
        %v2190 = vrot.slane %v2189, 4
        %v2191 = vadd.f32 %v2189, %v2190
        %v2192 = vrot.slane %v2191, 2
        %v2193 = vadd.f32 %v2191, %v2192
        %v2194 = vrot.slane %v2193, 1
        %v2195 = vadd.f32 %v2193, %v2194
        %v2196 = vadd.f32 %v2036, %v2037
        %v2197 = vadd.f32 %v2196, %v2038
        %v2198 = vadd.f32 %v2197, %v2039
        %v2199 = vadd.f32 %v2198, %v2040
        %v2200 = vadd.f32 %v2199, %v2041
        %v2201 = vadd.f32 %v2200, %v2042
        %v2202 = vadd.f32 %v2201, %v2043
        %v2203 = vadd.f32 %v2202, %v2044
        %v2204 = vadd.f32 %v2203, %v2045
        %v2205 = vadd.f32 %v2204, %v2046
        %v2206 = vadd.f32 %v2205, %v2047
        %v2207 = vadd.f32 %v2206, %v2048
        %v2208 = vadd.f32 %v2207, %v2049
        %v2209 = vadd.f32 %v2208, %v2050
        %v2210 = vadd.f32 %v2209, %v2051
        %v2211 = vrot.slane %v2210, 4
        %v2212 = vadd.f32 %v2210, %v2211
        %v2213 = vrot.slane %v2212, 2
        %v2214 = vadd.f32 %v2212, %v2213
        %v2215 = vrot.slane %v2214, 1
        %v2216 = vadd.f32 %v2214, %v2215
        %v2217 = vadd.f32 %v2052, %v2053
        %v2218 = vadd.f32 %v2217, %v2054
        %v2219 = vadd.f32 %v2218, %v2055
        %v2220 = vadd.f32 %v2219, %v2056
        %v2221 = vadd.f32 %v2220, %v2057
        %v2222 = vadd.f32 %v2221, %v2058
        %v2223 = vadd.f32 %v2222, %v2059
        %v2224 = vadd.f32 %v2223, %v2060
        %v2225 = vadd.f32 %v2224, %v2061
        %v2226 = vadd.f32 %v2225, %v2062
        %v2227 = vadd.f32 %v2226, %v2063
        %v2228 = vadd.f32 %v2227, %v2064
        %v2229 = vadd.f32 %v2228, %v2065
        %v2230 = vadd.f32 %v2229, %v2066
        %v2231 = vadd.f32 %v2230, %v2067
        %v2232 = vrot.slane %v2231, 4
        %v2233 = vadd.f32 %v2231, %v2232
        %v2234 = vrot.slane %v2233, 2
        %v2235 = vadd.f32 %v2233, %v2234
        %v2236 = vrot.slane %v2235, 1
        %v2237 = vadd.f32 %v2235, %v2236
        %v2246 = vsel %vm1257, %v2111, %v2090
        %v2247 = vsel %vm1259, %v2132, %v2246
        %v2248 = vsel %vm1261, %v2153, %v2247
        %v2249 = vsel %vm1263, %v2174, %v2248
        %v2250 = vsel %vm1265, %v2195, %v2249
        %v2251 = vsel %vm1267, %v2216, %v2250
        %v2252 = vsel %vm1269, %v2237, %v2251
        %v2254 = vadd.f32 %v2069, %v2252
        %2255 = vst [vmem:[%s2068] sm:$0xff] %v2254
        // Predicated region
        $region41: #{tpu_custom_call.1} parent=27 // pred_check
          %p2256 = pneg %p249
        $region42: #{tpu_custom_call.1} parent=27 // pred_check_branch
          %2258 = sbr.rel (%p2256) target = $region44
        $region43: #{tpu_custom_call.1} parent=27 // pred_region
          %v2259 = vld [vmem:[#allocation2] sm:$0xff]
          %v2260 = vld [vmem:[#allocation2 + $0x8] sm:$0xff]
          %v2261 = vsub.f32 %v2259, 9.6e-05
          %v2262 = vsub.f32 %v2260, 9.6e-05
          %2263 = vst [vmem:[%s245] sm:$0xff] %v2261
          %2264 = vst [vmem:[%s245 + $0x8] sm:$0xff] %v2262
        $region44: #{tpu_custom_call.1} parent=27 // pred_fallthru
          _
        %s2265 = sand.u32 %s120, 1
        %s2266 = scalar_lea.sflag [#allocation5], %s2265
        %s2267 = sand.u32 %s120, 1
        %s2268 = smul.addr %s2267, 16
        %s2269 = scalar_lea.vmem [#allocation8], %s2268
        // Predicated region
        $region45: #{tpu_custom_call.1} parent=27 // pred_check
          %p2270 = pneg %p130
        $region46: #{tpu_custom_call.1} parent=27 // pred_check_branch
          %2272 = sbr.rel (%p2270) target = $region48
        $region47: #{tpu_custom_call.1} parent=27 // pred_region
          %s2273 = smul.u32 2, %s29
          %s2275 = ssub.s32 256, 256
          %2276 = vsyncadd %s2266, %s2275
          %s2277 = sadd.s32 %s30, %s2273
          %s2278 = smul.addr %s28, 2
          %s2279 = sadd.s32 %s2277, %s2278
          %s2280 = smul.addr %s2279, 128
          %s2281 = scalar_lea.hbm %s2, %s2280
          %s2282 = sshll.u32 %s2269, 4
          %s2283 = int_to_ptr.vmem [resolvable:$true] %s2282
          %2288 = dma.vmem_to_hbm [thread:$0]  %s2283, 256, %s2281, %s2266, 128, 128, 8
        $region48: #{tpu_custom_call.1} parent=27 // pred_fallthru
          _
      $region28: #{tpu_custom_call.1} parent=5 // pred_fallthru
        _
      %p2289 = scmp.le.s32.totalorder 2, %s17
      // Predicated region
      $region49: #{tpu_custom_call.1} parent=5 // pred_check
        %p2290 = pneg %p2289
      $region50: #{tpu_custom_call.1} parent=5 // pred_check_branch
        %2292 = sbr.rel (%p2290) target = $region52
      $region51: #{tpu_custom_call.1} parent=5 // pred_region
        %s2293 = ssub.s32 %s17, 2
        // Predicated region
        $region53: #{tpu_custom_call.1} parent=51 // pred_check
          %p2294 = pneg %p136
        $region54: #{tpu_custom_call.1} parent=51 // pred_check_branch
          %2296 = sbr.rel (%p2294) target = $region56
        $region55: #{tpu_custom_call.1} parent=51 // pred_region
          %s2297 = sand.u32 %s121, 1
          %s2298 = scalar_lea.sflag [#allocation5], %s2297
          %s2299 = sand.u32 %s121, 1
          %s2300 = smul.addr %s2299, 16
          %s2301 = scalar_lea.vmem [#allocation8], %s2300
          %2302 = dma.done %s2298, 256
        $region56: #{tpu_custom_call.1} parent=51 // pred_fallthru
          _
      $region52: #{tpu_custom_call.1} parent=5 // pred_fallthru
        _
    $region6: #{tpu_custom_call.1} parent=1 // loop_footer
      %s21 = sadd.s32 1, %s17
    $region7: #{tpu_custom_call.1} parent=1 // loop_footer_branch
      %16 = sbr.rel target = $region3
    $region8: #{tpu_custom_call.1} parent=1 // loop_exit
      _
    %2303 = vsyncpa [#allocation4], 1
    %s2304 = scalar_lea.sflag [#allocation4], 1
    %2305 = vsyncpa %s2304, 1
    %2306 = vsyncpa [#allocation7], 1
    %s2307 = scalar_lea.sflag [#allocation7], 1
    %2308 = vsyncpa %s2307, 1
    %2309 = vsyncpa [#allocation5], 1
    %s2310 = scalar_lea.sflag [#allocation5], 1
    %2311 = vsyncpa %s2310, 1

</llo_original>
